<compile_context>
chip_gen: v6e
topology: v6e:2x2x1
jax: 0.10.0
libtpu: 0.0.40
codegen_flags: <defaults>
</compile_context>

<pallas_src>
import functools

import jax
import jax.numpy as jnp
from jax.experimental import pallas as pl
from jax.experimental.pallas import tpu as pltpu


def actor_critic_kernel(
    state_ref, act_ref,
    w1_ref, b1_ref, w2_ref, b2_ref, w3_ref, b3_ref, w3v_ref, b3v_ref,
    logp_ref, val_ref, ent_ref, *, n_out,
):
    # ---- fused trunk: 3 matmuls (bf16 in, f32 acc), 2 tanh ----
    x = state_ref[...]                                                      # bf16 [tb, n_in]
    h1 = jnp.tanh(jnp.dot(x, w1_ref[...],
                          preferred_element_type=jnp.float32) + b1_ref[...])   # f32 [tb, Hp]
    h2 = jnp.tanh(jnp.dot(h1.astype(jnp.bfloat16), w2_ref[...],
                          preferred_element_type=jnp.float32) + b2_ref[...])   # f32 [tb, Hp]
    # actor logits through a lane-dense (128-wide, zero-padded) weight tile
    y3 = jnp.dot(h2.astype(jnp.bfloat16), w3_ref[...],
                 preferred_element_type=jnp.float32) + b3_ref[...]             # f32 [tb, 128]
    logits = y3[:, :n_out]

    # critic value head kept fully in f32 (VPU multiply + lane reduce; cheap)
    val = jnp.sum(h2 * w3v_ref[...], axis=-1, keepdims=True) + b3v_ref[...]    # f32 [tb, 1]

    # ---- numerically stable softmax stats, exact (no approx reciprocal) ----
    m = jnp.max(logits, axis=-1, keepdims=True)
    shifted = logits - m
    e = jnp.exp(shifted)
    denom = jnp.sum(e, axis=-1, keepdims=True)
    log_denom = jnp.log(denom)

    tb = logits.shape[0]
    col = jax.lax.broadcasted_iota(jnp.int32, (tb, n_out), 1)
    onehot = (col == act_ref[...]).astype(jnp.float32)        # act_ref: [tb, 1] int32
    # log p(a) = shifted[a] - log_denom ;  H = log_denom - sum(e*shifted)/denom
    logp = jnp.sum(onehot * shifted, axis=-1, keepdims=True) - log_denom
    ent = log_denom - jnp.sum(e * shifted, axis=-1, keepdims=True) / denom

    logp_ref[...] = logp
    val_ref[...] = val
    ent_ref[...] = ent


def init_params(key, n_inputs, n_outputs, hidden):
    """Deterministic init matching nn.Linear default (U[-1/sqrt(fan_in), +])."""
    def linear(k, fan_in, fan_out):
        kw, kb = jax.random.split(k)
        bound = 1.0 / jnp.sqrt(fan_in)
        w = jax.random.uniform(kw, (fan_in, fan_out), jnp.float32, -bound, bound)
        b = jax.random.uniform(kb, (1, fan_out), jnp.float32, -bound, bound)
        return w, b

    ks = jax.random.split(key, 6)
    aw1, ab1 = linear(ks[0], n_inputs, hidden)
    aw2, ab2 = linear(ks[1], hidden, hidden)
    aw3, ab3 = linear(ks[2], hidden, n_outputs)
    vw1, vb1 = linear(ks[3], n_inputs, hidden)
    vw2, vb2 = linear(ks[4], hidden, hidden)
    vw3, vb3 = linear(ks[5], hidden, 1)
    return (aw1, ab1, aw2, ab2, aw3, ab3, vw1, vb1, vw2, vb2, vw3, vb3)


def pack_params(params):
    """Fuse actor+critic weights into wide slabs, pad to lane tiles, cast matmul
    weights to bf16 (biases + the f32 value head stay f32)."""
    (aw1, ab1, aw2, ab2, aw3, ab3, vw1, vb1, vw2, vb2, vw3, vb3) = params
    n_in, hidden = aw1.shape
    n_out = aw3.shape[1]
    h2tot = 2 * hidden
    # fused hidden width, padded (minimally) to the 128-lane tile
    hp = max(128, -(-h2tot // 128) * 128)
    # actor-logit output width, padded to a full lane tile so y3 is lane-dense
    n_out_p = max(128, -(-n_out // 128) * 128)

    w1 = jnp.zeros((n_in, hp), jnp.float32)
    w1 = w1.at[:, :hidden].set(aw1).at[:, hidden:h2tot].set(vw1)
    b1 = jnp.zeros((1, hp), jnp.float32)
    b1 = b1.at[:, :hidden].set(ab1).at[:, hidden:h2tot].set(vb1)

    w2 = jnp.zeros((hp, hp), jnp.float32)
    w2 = w2.at[:hidden, :hidden].set(aw2).at[hidden:h2tot, hidden:h2tot].set(vw2)
    b2 = jnp.zeros((1, hp), jnp.float32)
    b2 = b2.at[:, :hidden].set(ab2).at[:, hidden:h2tot].set(vb2)

    w3 = jnp.zeros((hp, n_out_p), jnp.float32)
    w3 = w3.at[:hidden, :n_out].set(aw3)
    b3 = jnp.zeros((1, n_out_p), jnp.float32)
    b3 = b3.at[:, :n_out].set(ab3)

    # critic value head: f32 row vector over the fused hidden, plus scalar bias
    w3v = jnp.zeros((1, hp), jnp.float32)
    w3v = w3v.at[0, hidden:h2tot].set(vw3[:, 0])
    b3v = vb3.reshape(1, 1).astype(jnp.float32)

    return (w1.astype(jnp.bfloat16), b1,
            w2.astype(jnp.bfloat16), b2,
            w3.astype(jnp.bfloat16), b3,
            w3v, b3v)


def _default_batch_tile(B):
    """Single tile up to 1024 rows (single-TC chips: grid is a serial loop, so
    extra steps are pure overhead). For larger B, pick the biggest divisor tile
    <= 1024 that is a multiple of 8, preferring an even step count for v7x."""
    cap = 1024
    if B <= cap:
        return B
    cap -= cap % 8
    best = None
    for tb in range(cap, 0, -8):
        if B % tb == 0:
            if (B // tb) % 2 == 0:          # even step count -> both v7x cores busy
                return tb
            if best is None:
                best = tb
    return best if best is not None else B


@functools.partial(jax.jit, static_argnames=("n_out", "batch_tile"))
def actor_critic_evaluate(state, action, packed_params, *, n_out, batch_tile=None):
    """Pallas-backed ActorCritic.evaluate(state, action).

    Returns (action_logprobs [B], state_value [B], dist_entropy [B]).
    """
    w1, b1, w2, b2, w3, b3, w3v, b3v = packed_params
    B, n_in = state.shape
    tb = _default_batch_tile(B) if batch_tile is None else batch_tile
    assert B % tb == 0

    # bf16 state at the pallas_call boundary: halves the streamed input bytes.
    state_bf16 = state.astype(jnp.bfloat16)
    action2d = action.reshape(B, 1).astype(jnp.int32)

    def batch_spec(cols):
        return pl.BlockSpec((tb, cols), lambda i: (i, 0))

    def rep_spec(arr):
        return pl.BlockSpec(arr.shape, lambda i: (0, 0))

    in_specs = [
        batch_spec(n_in),                 # state (bf16)
        batch_spec(1),                    # action (int32)
        rep_spec(w1), rep_spec(b1),
        rep_spec(w2), rep_spec(b2),
        rep_spec(w3), rep_spec(b3),
        rep_spec(w3v), rep_spec(b3v),
    ]
    col_spec = pl.BlockSpec((tb, 1), lambda i: (i, 0))
    out_specs = (col_spec, col_spec, col_spec)
    out_shape = (jax.ShapeDtypeStruct((B, 1), jnp.float32),
                 jax.ShapeDtypeStruct((B, 1), jnp.float32),
                 jax.ShapeDtypeStruct((B, 1), jnp.float32))

    kernel = functools.partial(actor_critic_kernel, n_out=n_out)

    logp, val, ent = pl.pallas_call(
        kernel,
        out_shape=out_shape,
        grid=(B // tb,),
        in_specs=in_specs,
        out_specs=out_specs,
        compiler_params=pltpu.CompilerParams(
            dimension_semantics=("parallel",)),
    )(state_bf16, action2d, w1, b1, w2, b2, w3, b3, w3v, b3v)

    return logp[:, 0], val[:, 0], ent[:, 0]


def reference_evaluate(state, action, params):
    (aw1, ab1, aw2, ab2, aw3, ab3, vw1, vb1, vw2, vb2, vw3, vb3) = params
    h = jnp.tanh(state @ aw1 + ab1)
    h = jnp.tanh(h @ aw2 + ab2)
    logits = h @ aw3 + ab3
    probs = jax.nn.softmax(logits, axis=-1)
    logp_all = jax.nn.log_softmax(logits, axis=-1)
    logp = jnp.take_along_axis(logp_all, action[:, None], axis=-1)[:, 0]
    ent = -jnp.sum(probs * logp_all, axis=-1)
    hv = jnp.tanh(state @ vw1 + vb1)
    hv = jnp.tanh(hv @ vw2 + vb2)
    val = (hv @ vw3 + vb3)[:, 0]
    return logp, val, ent


if __name__ == "__main__":
    # TODO(synk): act() (Categorical.sample + rollout-memory appends) is host-side
    # RNG / state management and is intentionally not part of the fused kernel.
    B, N_IN, N_OUT, HIDDEN = 256, 16, 8, 32   # single 256-row batch tile

    key = jax.random.PRNGKey(0)
    k_params, k_state, k_act = jax.random.split(key, 3)

    params = init_params(k_params, N_IN, N_OUT, HIDDEN)
    packed_params = pack_params(params)
    state = jax.random.normal(k_state, (B, N_IN), jnp.float32)
    action = jax.random.randint(k_act, (B,), 0, N_OUT, jnp.int32)

    logp, val, ent = actor_critic_evaluate(state, action, packed_params, n_out=N_OUT)
    jax.block_until_ready((logp, val, ent))

    # f32 reference; kernel uses bf16 state + bf16 MXU feeds with f32 accumulation
    # (and an f32 critic head), so tolerances reflect bf16 activation quantization.
    logp_r, val_r, ent_r = reference_evaluate(state, action, params)
    assert jnp.allclose(logp, logp_r, atol=2e-1), "logprob mismatch"
    assert jnp.allclose(ent, ent_r, atol=2e-1), "entropy mismatch"
    assert jnp.allclose(val, val_r, atol=1e-1), "value mismatch"

    print("KERNEL_OK")
</pallas_src>

<mosaic_0001>
module attributes {stable_mosaic.version = 11 : i64} {
  func.func @actor_critic_kernel(%arg0: i32, %arg1: memref<256x16xbf16, #tpu.memory_space<vmem>>, %arg2: memref<256x1xi32, #tpu.memory_space<vmem>>, %arg3: memref<16x128xbf16, #tpu.memory_space<vmem>>, %arg4: memref<1x128xf32, #tpu.memory_space<vmem>>, %arg5: memref<128x128xbf16, #tpu.memory_space<vmem>>, %arg6: memref<1x128xf32, #tpu.memory_space<vmem>>, %arg7: memref<128x128xbf16, #tpu.memory_space<vmem>>, %arg8: memref<1x128xf32, #tpu.memory_space<vmem>>, %arg9: memref<1x128xf32, #tpu.memory_space<vmem>>, %arg10: memref<1x1xf32, #tpu.memory_space<vmem>>, %arg11: memref<256x1xf32, #tpu.memory_space<vmem>>, %arg12: memref<256x1xf32, #tpu.memory_space<vmem>>, %arg13: memref<256x1xf32, #tpu.memory_space<vmem>>) attributes {dimension_semantics = [#tpu.dimension_semantics<parallel>], iteration_bounds = array<i64: 1>, scalar_prefetch = 0 : i64, scratch_operands = 0 : i64, tpu.core_type = #tpu.core_type<tc>, window_params = [{transform_indices = @transform_0, window_bounds = array<i64: 256, 16>}, {transform_indices = @transform_1, window_bounds = array<i64: 256, 1>}, {pipeline_mode = #tpu.pipeline_mode<synchronous>, transform_indices = @transform_2, window_bounds = array<i64: 16, 128>}, {pipeline_mode = #tpu.pipeline_mode<synchronous>, transform_indices = @transform_3, window_bounds = array<i64: 1, 128>}, {pipeline_mode = #tpu.pipeline_mode<synchronous>, transform_indices = @transform_4, window_bounds = array<i64: 128, 128>}, {pipeline_mode = #tpu.pipeline_mode<synchronous>, transform_indices = @transform_5, window_bounds = array<i64: 1, 128>}, {pipeline_mode = #tpu.pipeline_mode<synchronous>, transform_indices = @transform_6, window_bounds = array<i64: 128, 128>}, {pipeline_mode = #tpu.pipeline_mode<synchronous>, transform_indices = @transform_7, window_bounds = array<i64: 1, 128>}, {pipeline_mode = #tpu.pipeline_mode<synchronous>, transform_indices = @transform_8, window_bounds = array<i64: 1, 128>}, {pipeline_mode = #tpu.pipeline_mode<synchronous>, transform_indices = @transform_9, window_bounds = array<i64: 1, 1>}, {transform_indices = @transform_10, window_bounds = array<i64: 256, 1>}, {transform_indices = @transform_11, window_bounds = array<i64: 256, 1>}, {transform_indices = @transform_12, window_bounds = array<i64: 256, 1>}]} {
    %c0 = arith.constant 0 : index
    %c0_0 = arith.constant 0 : index
    %0 = vector.load %arg1[%c0, %c0_0] : memref<256x16xbf16, #tpu.memory_space<vmem>>, vector<256x16xbf16>
    %c0_1 = arith.constant 0 : index
    %c0_2 = arith.constant 0 : index
    %1 = vector.load %arg3[%c0_1, %c0_2] : memref<16x128xbf16, #tpu.memory_space<vmem>>, vector<16x128xbf16>
    %cst = arith.constant dense<0.000000e+00> : vector<256x128xf32>
    %2 = tpu.matmul %0, %1, %cst {dimension_numbers = #tpu.dot_dimension_numbers<[1], [0], [0], [1], [0, 0, 1, 1], [], []>} : vector<256x16xbf16>, vector<16x128xbf16>, vector<256x128xf32> -> vector<256x128xf32>
    %c0_3 = arith.constant 0 : index
    %c0_4 = arith.constant 0 : index
    %3 = vector.load %arg4[%c0_3, %c0_4] : memref<1x128xf32, #tpu.memory_space<vmem>>, vector<1x128xf32>
    %4 = vector.broadcast %3 : vector<1x128xf32> to vector<256x128xf32>
    %5 = arith.addf %2, %4 : vector<256x128xf32>
    %6 = math.tanh %5 : vector<256x128xf32>
    %7 = arith.truncf %6 : vector<256x128xf32> to vector<256x128xbf16>
    %c0_5 = arith.constant 0 : index
    %c0_6 = arith.constant 0 : index
    %8 = vector.load %arg5[%c0_5, %c0_6] : memref<128x128xbf16, #tpu.memory_space<vmem>>, vector<128x128xbf16>
    %cst_7 = arith.constant dense<0.000000e+00> : vector<256x128xf32>
    %9 = tpu.matmul %7, %8, %cst_7 {dimension_numbers = #tpu.dot_dimension_numbers<[1], [0], [0], [1], [0, 0, 1, 1], [], []>} : vector<256x128xbf16>, vector<128x128xbf16>, vector<256x128xf32> -> vector<256x128xf32>
    %c0_8 = arith.constant 0 : index
    %c0_9 = arith.constant 0 : index
    %10 = vector.load %arg6[%c0_8, %c0_9] : memref<1x128xf32, #tpu.memory_space<vmem>>, vector<1x128xf32>
    %11 = vector.broadcast %10 : vector<1x128xf32> to vector<256x128xf32>
    %12 = arith.addf %9, %11 : vector<256x128xf32>
    %13 = math.tanh %12 : vector<256x128xf32>
    %14 = arith.truncf %13 : vector<256x128xf32> to vector<256x128xbf16>
    %c0_10 = arith.constant 0 : index
    %c0_11 = arith.constant 0 : index
    %15 = vector.load %arg7[%c0_10, %c0_11] : memref<128x128xbf16, #tpu.memory_space<vmem>>, vector<128x128xbf16>
    %cst_12 = arith.constant dense<0.000000e+00> : vector<256x128xf32>
    %16 = tpu.matmul %14, %15, %cst_12 {dimension_numbers = #tpu.dot_dimension_numbers<[1], [0], [0], [1], [0, 0, 1, 1], [], []>} : vector<256x128xbf16>, vector<128x128xbf16>, vector<256x128xf32> -> vector<256x128xf32>
    %c0_13 = arith.constant 0 : index
    %c0_14 = arith.constant 0 : index
    %17 = vector.load %arg8[%c0_13, %c0_14] : memref<1x128xf32, #tpu.memory_space<vmem>>, vector<1x128xf32>
    %18 = vector.broadcast %17 : vector<1x128xf32> to vector<256x128xf32>
    %19 = arith.addf %16, %18 : vector<256x128xf32>
    %20 = vector.extract_strided_slice %19 {offsets = [0, 0], sizes = [256, 8], strides = [1, 1]} : vector<256x128xf32> to vector<256x8xf32>
    %c0_15 = arith.constant 0 : index
    %c0_16 = arith.constant 0 : index
    %21 = vector.load %arg9[%c0_15, %c0_16] : memref<1x128xf32, #tpu.memory_space<vmem>>, vector<1x128xf32>
    %22 = vector.broadcast %21 : vector<1x128xf32> to vector<256x128xf32>
    %23 = arith.mulf %13, %22 : vector<256x128xf32>
    %cst_17 = arith.constant dense<0.000000e+00> : vector<256xf32>
    %24 = vector.multi_reduction <add>, %23, %cst_17 [1] : vector<256x128xf32> to vector<256xf32>
    %25 = vector.shape_cast %24 : vector<256xf32> to vector<256x1xf32>
    %c0_18 = arith.constant 0 : index
    %c0_19 = arith.constant 0 : index
    %26 = vector.load %arg10[%c0_18, %c0_19] : memref<1x1xf32, #tpu.memory_space<vmem>>, vector<1x1xf32>
    %27 = vector.broadcast %26 : vector<1x1xf32> to vector<256x1xf32>
    %28 = arith.addf %25, %27 : vector<256x1xf32>
    %cst_20 = arith.constant dense<0xFF800000> : vector<256xf32>
    %29 = vector.multi_reduction <maximumf>, %20, %cst_20 [1] : vector<256x8xf32> to vector<256xf32>
    %30 = vector.shape_cast %29 : vector<256xf32> to vector<256x1xf32>
    %31 = vector.broadcast %30 : vector<256x1xf32> to vector<256x8xf32>
    %32 = arith.subf %20, %31 : vector<256x8xf32>
    %33 = math.exp %32 : vector<256x8xf32>
    %cst_21 = arith.constant dense<0.000000e+00> : vector<256xf32>
    %34 = vector.multi_reduction <add>, %33, %cst_21 [1] : vector<256x8xf32> to vector<256xf32>
    %35 = vector.shape_cast %34 : vector<256xf32> to vector<256x1xf32>
    %36 = math.log %35 : vector<256x1xf32>
    %37 = tpu.iota {dimensions = array<i32: 1>} : vector<256x8xi32>
    %c0_22 = arith.constant 0 : index
    %c0_23 = arith.constant 0 : index
    %38 = vector.load %arg2[%c0_22, %c0_23] : memref<256x1xi32, #tpu.memory_space<vmem>>, vector<256x1xi32>
    %39 = vector.broadcast %38 : vector<256x1xi32> to vector<256x8xi32>
    %40 = arith.cmpi eq, %37, %39 : vector<256x8xi32>
    %41 = arith.extui %40 : vector<256x8xi1> to vector<256x8xi32>
    %42 = arith.sitofp %41 : vector<256x8xi32> to vector<256x8xf32>
    %43 = arith.mulf %42, %32 : vector<256x8xf32>
    %cst_24 = arith.constant dense<0.000000e+00> : vector<256xf32>
    %44 = vector.multi_reduction <add>, %43, %cst_24 [1] : vector<256x8xf32> to vector<256xf32>
    %45 = vector.shape_cast %44 : vector<256xf32> to vector<256x1xf32>
    %46 = arith.subf %45, %36 : vector<256x1xf32>
    %47 = arith.mulf %33, %32 : vector<256x8xf32>
    %cst_25 = arith.constant dense<0.000000e+00> : vector<256xf32>
    %48 = vector.multi_reduction <add>, %47, %cst_25 [1] : vector<256x8xf32> to vector<256xf32>
    %49 = vector.shape_cast %48 : vector<256xf32> to vector<256x1xf32>
    %50 = arith.divf %49, %35 : vector<256x1xf32>
    %51 = arith.subf %36, %50 : vector<256x1xf32>
    %c0_26 = arith.constant 0 : index
    %c0_27 = arith.constant 0 : index
    %52 = vector.load %arg11[%c0_26, %c0_27] : memref<256x1xf32, #tpu.memory_space<vmem>>, vector<256x1xf32>
    tpu.vector_store %arg11[%c0_26, %c0_27], %46 {strides = array<i32>} : memref<256x1xf32, #tpu.memory_space<vmem>>, vector<256x1xf32>,
    %c0_28 = arith.constant 0 : index
    %c0_29 = arith.constant 0 : index
    %53 = vector.load %arg12[%c0_28, %c0_29] : memref<256x1xf32, #tpu.memory_space<vmem>>, vector<256x1xf32>
    tpu.vector_store %arg12[%c0_28, %c0_29], %28 {strides = array<i32>} : memref<256x1xf32, #tpu.memory_space<vmem>>, vector<256x1xf32>,
    %c0_30 = arith.constant 0 : index
    %c0_31 = arith.constant 0 : index
    %54 = vector.load %arg13[%c0_30, %c0_31] : memref<256x1xf32, #tpu.memory_space<vmem>>, vector<256x1xf32>
    tpu.vector_store %arg13[%c0_30, %c0_31], %51 {strides = array<i32>} : memref<256x1xf32, #tpu.memory_space<vmem>>, vector<256x1xf32>,
    return
  }
  func.func @transform_0(%arg0: i32) -> (i32, i32) {
    %c0_i32 = arith.constant 0 : i32
    %c0_i32_0 = arith.constant 0 : i32
    return %arg0, %c0_i32 : i32, i32
  }
  func.func @transform_1(%arg0: i32) -> (i32, i32) {
    %c0_i32 = arith.constant 0 : i32
    %c0_i32_0 = arith.constant 0 : i32
    return %arg0, %c0_i32 : i32, i32
  }
  func.func @transform_2(%arg0: i32) -> (i32, i32) {
    %c0_i32 = arith.constant 0 : i32
    %c0_i32_0 = arith.constant 0 : i32
    %c0_i32_1 = arith.constant 0 : i32
    return %c0_i32, %c0_i32_0 : i32, i32
  }
  func.func @transform_3(%arg0: i32) -> (i32, i32) {
    %c0_i32 = arith.constant 0 : i32
    %c0_i32_0 = arith.constant 0 : i32
    %c0_i32_1 = arith.constant 0 : i32
    return %c0_i32, %c0_i32_0 : i32, i32
  }
  func.func @transform_4(%arg0: i32) -> (i32, i32) {
    %c0_i32 = arith.constant 0 : i32
    %c0_i32_0 = arith.constant 0 : i32
    %c0_i32_1 = arith.constant 0 : i32
    return %c0_i32, %c0_i32_0 : i32, i32
  }
  func.func @transform_5(%arg0: i32) -> (i32, i32) {
    %c0_i32 = arith.constant 0 : i32
    %c0_i32_0 = arith.constant 0 : i32
    %c0_i32_1 = arith.constant 0 : i32
    return %c0_i32, %c0_i32_0 : i32, i32
  }
  func.func @transform_6(%arg0: i32) -> (i32, i32) {
    %c0_i32 = arith.constant 0 : i32
    %c0_i32_0 = arith.constant 0 : i32
    %c0_i32_1 = arith.constant 0 : i32
    return %c0_i32, %c0_i32_0 : i32, i32
  }
  func.func @transform_7(%arg0: i32) -> (i32, i32) {
    %c0_i32 = arith.constant 0 : i32
    %c0_i32_0 = arith.constant 0 : i32
    %c0_i32_1 = arith.constant 0 : i32
    return %c0_i32, %c0_i32_0 : i32, i32
  }
  func.func @transform_8(%arg0: i32) -> (i32, i32) {
    %c0_i32 = arith.constant 0 : i32
    %c0_i32_0 = arith.constant 0 : i32
    %c0_i32_1 = arith.constant 0 : i32
    return %c0_i32, %c0_i32_0 : i32, i32
  }
  func.func @transform_9(%arg0: i32) -> (i32, i32) {
    %c0_i32 = arith.constant 0 : i32
    %c0_i32_0 = arith.constant 0 : i32
    %c0_i32_1 = arith.constant 0 : i32
    return %c0_i32, %c0_i32_0 : i32, i32
  }
  func.func @transform_10(%arg0: i32) -> (i32, i32) {
    %c0_i32 = arith.constant 0 : i32
    %c0_i32_0 = arith.constant 0 : i32
    return %arg0, %c0_i32 : i32, i32
  }
  func.func @transform_11(%arg0: i32) -> (i32, i32) {
    %c0_i32 = arith.constant 0 : i32
    %c0_i32_0 = arith.constant 0 : i32
    return %arg0, %c0_i32 : i32, i32
  }
  func.func @transform_12(%arg0: i32) -> (i32, i32) {
    %c0_i32 = arith.constant 0 : i32
    %c0_i32_0 = arith.constant 0 : i32
    return %arg0, %c0_i32 : i32, i32
  }
}

</mosaic_0001>

<llo_original>
// kernel: actor_critic_evaluate.1
$region0: #{actor_critic_evaluate.1}
  #allocation0 [shape = 'u32[]', space=smem, size = 0x4, offset = 0x4, fixed_abs, tag = 'smem constant byte address 0x4 - core index']
  #allocation1 [shape = 'u32[144,128]{1,0:T(1,128)}', space=vmem, size = 0x12000, scoped, tag = 'internal scratch']
  #allocation2 [shape = 'f32[1,1]{1,0:T(1,128)S(1)}', space=vmem, size = 0x200, scoped, tag = 'scoped memory for actor_critic_evaluate.1']
  %s0 = inlined_call_operand.vmem [shape: bf16[256,16], index: 0, kind: input, shape index: {}]
  %s1 = inlined_call_operand.vmem [shape: s32[256,1], index: 1, kind: input, shape index: {}]
  %s2 = inlined_call_operand.vmem [shape: bf16[16,128], index: 2, kind: input, shape index: {}]
  %s3 = inlined_call_operand.vmem [shape: f32[1,128], index: 3, kind: input, shape index: {}]
  %s4 = inlined_call_operand.vmem [shape: bf16[128,128], index: 4, kind: input, shape index: {}]
  %s5 = inlined_call_operand.vmem [shape: f32[1,128], index: 5, kind: input, shape index: {}]
  %s6 = inlined_call_operand.vmem [shape: bf16[128,128], index: 6, kind: input, shape index: {}]
  %s7 = inlined_call_operand.vmem [shape: f32[1,128], index: 7, kind: input, shape index: {}]
  %s8 = inlined_call_operand.vmem [shape: f32[1,128], index: 8, kind: input, shape index: {}]
  %s9 = inlined_call_operand.<no memory space> [shape: f32[1,1], index: 9, kind: input, shape index: {}]
  %s10 = inlined_call_operand.vmem [shape: f32[256,1], index: 10, kind: output, shape index: {0}]
  %s11 = inlined_call_operand.vmem [shape: f32[256,1], index: 11, kind: output, shape index: {1}]
  %s12 = inlined_call_operand.vmem [shape: f32[256,1], index: 12, kind: output, shape index: {2}]
  %13 = xla_tuple %s10, %s11, %s12
  %s14 = sld [smem:[#allocation0]]
  $region66: #{actor_critic_evaluate.1} parent=0
    _
  %s16 = ssub.s32 1, %s14
  %s17 = scalar_select 0, %s16, %s14
  %v18 = vstv %s9
  %19 = vst [vmem:[#allocation2] sm:$0x1] %v18
  // Predicated region
  $region2: #{actor_critic_evaluate.1} parent=0 // pred_check
    _
  $region3: #{actor_critic_evaluate.1} parent=0 // pred_check_branch
    %21 = sbr.rel (0) target = $region5
  $region4: #{actor_critic_evaluate.1} parent=0 // pred_region
    _
  $region5: #{actor_critic_evaluate.1} parent=0 // pred_fallthru
    _
  // Predicated region
  $region6: #{actor_critic_evaluate.1} parent=0 // pred_check
    _
  $region7: #{actor_critic_evaluate.1} parent=0 // pred_check_branch
    %23 = sbr.rel (0) target = $region9
  $region8: #{actor_critic_evaluate.1} parent=0 // pred_region
    _
  $region9: #{actor_critic_evaluate.1} parent=0 // pred_fallthru
    _
  // Predicated region
  $region10: #{actor_critic_evaluate.1} parent=0 // pred_check
    _
  $region11: #{actor_critic_evaluate.1} parent=0 // pred_check_branch
    %25 = sbr.rel (0) target = $region13
  $region12: #{actor_critic_evaluate.1} parent=0 // pred_region
    _
  $region13: #{actor_critic_evaluate.1} parent=0 // pred_fallthru
    _
  // Predicated region
  $region14: #{actor_critic_evaluate.1} parent=0 // pred_check
    _
  $region15: #{actor_critic_evaluate.1} parent=0 // pred_check_branch
    %27 = sbr.rel (0) target = $region17
  $region16: #{actor_critic_evaluate.1} parent=0 // pred_region
    _
  $region17: #{actor_critic_evaluate.1} parent=0 // pred_fallthru
    _
  // Predicated region
  $region18: #{actor_critic_evaluate.1} parent=0 // pred_check
    _
  $region19: #{actor_critic_evaluate.1} parent=0 // pred_check_branch
    %29 = sbr.rel (0) target = $region21
  $region20: #{actor_critic_evaluate.1} parent=0 // pred_region
    _
  $region21: #{actor_critic_evaluate.1} parent=0 // pred_fallthru
    _
  // Predicated region
  $region22: #{actor_critic_evaluate.1} parent=0 // pred_check
    _
  $region23: #{actor_critic_evaluate.1} parent=0 // pred_check_branch
    %31 = sbr.rel (0) target = $region25
  $region24: #{actor_critic_evaluate.1} parent=0 // pred_region
    _
  $region25: #{actor_critic_evaluate.1} parent=0 // pred_fallthru
    _
  // Predicated region
  $region26: #{actor_critic_evaluate.1} parent=0 // pred_check
    _
  $region27: #{actor_critic_evaluate.1} parent=0 // pred_check_branch
    %33 = sbr.rel (0) target = $region29
  $region28: #{actor_critic_evaluate.1} parent=0 // pred_region
    _
  $region29: #{actor_critic_evaluate.1} parent=0 // pred_fallthru
    _
  // Predicated region
  $region30: #{actor_critic_evaluate.1} parent=0 // pred_check
    _
  $region31: #{actor_critic_evaluate.1} parent=0 // pred_check_branch
    %35 = sbr.rel (0) target = $region33
  $region32: #{actor_critic_evaluate.1} parent=0 // pred_region
    _
  $region33: #{actor_critic_evaluate.1} parent=0 // pred_fallthru
    _
  // Predicated region
  $region34: #{actor_critic_evaluate.1} parent=0 // pred_check
    _
  $region35: #{actor_critic_evaluate.1} parent=0 // pred_check_branch
    %37 = sbr.rel (0) target = $region37
  $region36: #{actor_critic_evaluate.1} parent=0 // pred_region
    _
  $region37: #{actor_critic_evaluate.1} parent=0 // pred_fallthru
    _
  // Predicated region
  $region38: #{actor_critic_evaluate.1} parent=0 // pred_check
    _
  $region39: #{actor_critic_evaluate.1} parent=0 // pred_check_branch
    %39 = sbr.rel (0) target = $region41
  $region40: #{actor_critic_evaluate.1} parent=0 // pred_region
    _
  $region41: #{actor_critic_evaluate.1} parent=0 // pred_fallthru
    _
  %v41 = vld [vmem:[%s0] sm:$0xf]
  %v42 = vld [vmem:[%s0 + $0x4] sm:$0xf]
  %v43 = vld [vmem:[%s0 + $0x8] sm:$0xf]
  %v44 = vld [vmem:[%s0 + $0xc] sm:$0xf]
  %v45 = vld [vmem:[%s0 + $0x10] sm:$0xf]
  %v46 = vld [vmem:[%s0 + $0x14] sm:$0xf]
  %v47 = vld [vmem:[%s0 + $0x18] sm:$0xf]
  %v48 = vld [vmem:[%s0 + $0x1c] sm:$0xf]
  %v49 = vld [vmem:[%s0 + $0x20] sm:$0xf]
  %v50 = vld [vmem:[%s0 + $0x24] sm:$0xf]
  %v51 = vld [vmem:[%s0 + $0x28] sm:$0xf]
  %v52 = vld [vmem:[%s0 + $0x2c] sm:$0xf]
  %v53 = vld [vmem:[%s0 + $0x30] sm:$0xf]
  %v54 = vld [vmem:[%s0 + $0x34] sm:$0xf]
  %v55 = vld [vmem:[%s0 + $0x38] sm:$0xf]
  %v56 = vld [vmem:[%s0 + $0x3c] sm:$0xf]
  %v57 = vld [vmem:[%s0 + $0x40] sm:$0xf]
  %v58 = vld [vmem:[%s0 + $0x44] sm:$0xf]
  %v59 = vld [vmem:[%s0 + $0x48] sm:$0xf]
  %v60 = vld [vmem:[%s0 + $0x4c] sm:$0xf]
  %v61 = vld [vmem:[%s0 + $0x50] sm:$0xf]
  %v62 = vld [vmem:[%s0 + $0x54] sm:$0xf]
  %v63 = vld [vmem:[%s0 + $0x58] sm:$0xf]
  %v64 = vld [vmem:[%s0 + $0x5c] sm:$0xf]
  %v65 = vld [vmem:[%s0 + $0x60] sm:$0xf]
  %v66 = vld [vmem:[%s0 + $0x64] sm:$0xf]
  %v67 = vld [vmem:[%s0 + $0x68] sm:$0xf]
  %v68 = vld [vmem:[%s0 + $0x6c] sm:$0xf]
  %v69 = vld [vmem:[%s0 + $0x70] sm:$0xf]
  %v70 = vld [vmem:[%s0 + $0x74] sm:$0xf]
  %v71 = vld [vmem:[%s0 + $0x78] sm:$0xf]
  %v72 = vld [vmem:[%s0 + $0x7c] sm:$0xf]
  %v73 = vld [vmem:[%s2] sm:$0xf]
  %v74 = vld [vmem:[%s2 + $0x4] sm:$0xf]
  %v75 = vld [vmem:[%s3] sm:$0x1]
  %v77 = vlaneseq
  %v78 = vshrl.u32 %v77, 7
  %v79 = vsub.s32 0, %v78
  %v80 = vrot.slane %v75, %v79
  %v114 = vunpack.c.l.b16 %v41
  %v115 = vunpack.c.l.b16 %v42
  %v116 = vunpack.c.l.b16 %v43
  %v117 = vunpack.c.l.b16 %v44
  %v118 = vunpack.c.l.b16 %v45
  %v119 = vunpack.c.l.b16 %v46
  %v120 = vunpack.c.l.b16 %v47
  %v121 = vunpack.c.l.b16 %v48
  %v122 = vunpack.c.l.b16 %v49
  %v123 = vunpack.c.l.b16 %v50
  %v124 = vunpack.c.l.b16 %v51
  %v125 = vunpack.c.l.b16 %v52
  %v126 = vunpack.c.l.b16 %v53
  %v127 = vunpack.c.l.b16 %v54
  %v128 = vunpack.c.l.b16 %v55
  %v129 = vunpack.c.l.b16 %v56
  %v130 = vunpack.c.l.b16 %v57
  %v131 = vunpack.c.l.b16 %v58
  %v132 = vunpack.c.l.b16 %v59
  %v133 = vunpack.c.l.b16 %v60
  %v134 = vunpack.c.l.b16 %v61
  %v135 = vunpack.c.l.b16 %v62
  %v136 = vunpack.c.l.b16 %v63
  %v137 = vunpack.c.l.b16 %v64
  %v138 = vunpack.c.l.b16 %v65
  %v139 = vunpack.c.l.b16 %v66
  %v140 = vunpack.c.l.b16 %v67
  %v141 = vunpack.c.l.b16 %v68
  %v142 = vunpack.c.l.b16 %v69
  %v143 = vunpack.c.l.b16 %v70
  %v144 = vunpack.c.l.b16 %v71
  %v145 = vunpack.c.l.b16 %v72
  %v146 = vpack.c.b16 %v115, %v114
  %v147 = vpack.c.b16 %v117, %v116
  %v148 = vpack.c.b16 %v119, %v118
  %v149 = vpack.c.b16 %v121, %v120
  %v150 = vpack.c.b16 %v123, %v122
  %v151 = vpack.c.b16 %v125, %v124
  %v152 = vpack.c.b16 %v127, %v126
  %v153 = vpack.c.b16 %v129, %v128
  %v154 = vpack.c.b16 %v131, %v130
  %v155 = vpack.c.b16 %v133, %v132
  %v156 = vpack.c.b16 %v135, %v134
  %v157 = vpack.c.b16 %v137, %v136
  %v158 = vpack.c.b16 %v139, %v138
  %v159 = vpack.c.b16 %v141, %v140
  %v160 = vpack.c.b16 %v143, %v142
  %v161 = vpack.c.b16 %v145, %v144
  %v164 = vunpack.c.l.b16 %v73
  %v165 = vunpack.c.l.b16 %v74
  %v166 = vpack.c.b16 %v165, %v164
  %vm168 = vcmask 130048
  %v170 = vsel %vm168, %v146, 0
  %v173 = vsel %vm168, %v147, 0
  %v176 = vsel %vm168, %v148, 0
  %v179 = vsel %vm168, %v149, 0
  %v182 = vsel %vm168, %v150, 0
  %v185 = vsel %vm168, %v151, 0
  %v188 = vsel %vm168, %v152, 0
  %v191 = vsel %vm168, %v153, 0
  %v194 = vsel %vm168, %v154, 0
  %v197 = vsel %vm168, %v155, 0
  %v200 = vsel %vm168, %v156, 0
  %v203 = vsel %vm168, %v157, 0
  %v206 = vsel %vm168, %v158, 0
  %v209 = vsel %vm168, %v159, 0
  %v212 = vsel %vm168, %v160, 0
  %v215 = vsel %vm168, %v161, 0
  %217 = vmatprep.subr.bf16.mxu0 0
  %218 = vmatpush1.bf16.msra.mxu0 0
  %219 = vmatprep.subr.bf16.mxu0 0
  %220 = vmatpush1.bf16.msra.mxu0 0
  %221 = vmatprep.subr.bf16.mxu0 0
  %222 = vmatpush1.bf16.msra.mxu0 0
  %223 = vmatprep.subr.bf16.mxu0 0
  %224 = vmatpush1.bf16.msra.mxu0 0
  %225 = vmatprep.subr.bf16.mxu0 0
  %226 = vmatpush1.bf16.msra.mxu0 0
  %227 = vmatprep.subr.bf16.mxu0 0
  %228 = vmatpush1.bf16.msra.mxu0 0
  %229 = vmatprep.subr.bf16.mxu0 0
  %230 = vmatpush1.bf16.msra.mxu0 0
  %231 = vmatprep.subr.bf16.mxu0 0
  %232 = vmatpush1.bf16.msra.mxu0 %v166
  %233 = vmatprep.subr.bf16.mxu0 0
  %234 = vmatpush2.bf16.msra.mxu0 0
  %235 = vmatprep.subr.bf16.mxu0 0
  %236 = vmatpush2.bf16.msra.mxu0 0
  %237 = vmatprep.subr.bf16.mxu0 0
  %238 = vmatpush2.bf16.msra.mxu0 0
  %239 = vmatprep.subr.bf16.mxu0 0
  %240 = vmatpush2.bf16.msra.mxu0 0
  %241 = vmatprep.subr.bf16.mxu0 0
  %242 = vmatpush2.bf16.msra.mxu0 0
  %243 = vmatprep.subr.bf16.mxu0 0
  %244 = vmatpush2.bf16.msra.mxu0 0
  %245 = vmatprep.subr.bf16.mxu0 0
  %246 = vmatpush2.bf16.msra.mxu0 0
  %247 = vmatprep.subr.bf16.mxu0 0
  %248 = vmatpush2.bf16.msra.mxu0 0
  %249 = vmatprep.mubr.bf16.mxu0 0
  %250 = vmatmul.mubr.bf16.gmra.mxu0 %v170
  %v251 = vpop.f32.mrf.mxu0
  %v252 = vadd.f32 %v80, %v251
  %v253 = vpop.f32.mrf.mxu0
  %v254 = vpop.f32.mrf.mxu0
  %v255 = vadd.f32 %v80, %v254
  %v256 = vpop.f32.mrf.mxu0
  %257 = vmatprep.mubr.bf16.mxu0 0
  %258 = vmatmul.mubr.bf16.gmra.mxu0 %v173
  %v259 = vpop.f32.mrf.mxu0
  %v260 = vadd.f32 %v80, %v259
  %v261 = vpop.f32.mrf.mxu0
  %v262 = vpop.f32.mrf.mxu0
  %v263 = vadd.f32 %v80, %v262
  %v264 = vpop.f32.mrf.mxu0
  %265 = vmatprep.mubr.bf16.mxu0 0
  %266 = vmatmul.mubr.bf16.gmra.mxu0 %v176
  %v267 = vpop.f32.mrf.mxu0
  %v268 = vadd.f32 %v80, %v267
  %v269 = vpop.f32.mrf.mxu0
  %v270 = vpop.f32.mrf.mxu0
  %v271 = vadd.f32 %v80, %v270
  %v272 = vpop.f32.mrf.mxu0
  %273 = vmatprep.mubr.bf16.mxu0 0
  %274 = vmatmul.mubr.bf16.gmra.mxu0 %v179
  %v275 = vpop.f32.mrf.mxu0
  %v276 = vadd.f32 %v80, %v275
  %v277 = vpop.f32.mrf.mxu0
  %v278 = vpop.f32.mrf.mxu0
  %v279 = vadd.f32 %v80, %v278
  %v280 = vpop.f32.mrf.mxu0
  %281 = vmatprep.mubr.bf16.mxu0 0
  %282 = vmatmul.mubr.bf16.gmra.mxu0 %v182
  %v283 = vpop.f32.mrf.mxu0
  %v284 = vadd.f32 %v80, %v283
  %v285 = vpop.f32.mrf.mxu0
  %v286 = vpop.f32.mrf.mxu0
  %v287 = vadd.f32 %v80, %v286
  %v288 = vpop.f32.mrf.mxu0
  %289 = vmatprep.mubr.bf16.mxu0 0
  %290 = vmatmul.mubr.bf16.gmra.mxu0 %v185
  %v291 = vpop.f32.mrf.mxu0
  %v292 = vadd.f32 %v80, %v291
  %v293 = vpop.f32.mrf.mxu0
  %v294 = vpop.f32.mrf.mxu0
  %v295 = vadd.f32 %v80, %v294
  %v296 = vpop.f32.mrf.mxu0
  %297 = vmatprep.mubr.bf16.mxu0 0
  %298 = vmatmul.mubr.bf16.gmra.mxu0 %v188
  %v299 = vpop.f32.mrf.mxu0
  %v300 = vadd.f32 %v80, %v299
  %v301 = vpop.f32.mrf.mxu0
  %v302 = vpop.f32.mrf.mxu0
  %v303 = vadd.f32 %v80, %v302
  %v304 = vpop.f32.mrf.mxu0
  %305 = vmatprep.mubr.bf16.mxu0 0
  %306 = vmatmul.mubr.bf16.gmra.mxu0 %v191
  %v307 = vpop.f32.mrf.mxu0
  %v308 = vadd.f32 %v80, %v307
  %v309 = vpop.f32.mrf.mxu0
  %v310 = vpop.f32.mrf.mxu0
  %v311 = vadd.f32 %v80, %v310
  %v312 = vpop.f32.mrf.mxu0
  %313 = vmatprep.mubr.bf16.mxu0 0
  %314 = vmatmul.mubr.bf16.gmra.mxu0 %v194
  %v315 = vpop.f32.mrf.mxu0
  %v316 = vadd.f32 %v80, %v315
  %v317 = vpop.f32.mrf.mxu0
  %v318 = vpop.f32.mrf.mxu0
  %v319 = vadd.f32 %v80, %v318
  %v320 = vpop.f32.mrf.mxu0
  %321 = vmatprep.mubr.bf16.mxu0 0
  %322 = vmatmul.mubr.bf16.gmra.mxu0 %v197
  %v323 = vpop.f32.mrf.mxu0
  %v324 = vadd.f32 %v80, %v323
  %v325 = vpop.f32.mrf.mxu0
  %v326 = vpop.f32.mrf.mxu0
  %v327 = vadd.f32 %v80, %v326
  %v328 = vpop.f32.mrf.mxu0
  %329 = vmatprep.mubr.bf16.mxu0 0
  %330 = vmatmul.mubr.bf16.gmra.mxu0 %v200
  %v331 = vpop.f32.mrf.mxu0
  %v332 = vadd.f32 %v80, %v331
  %v333 = vpop.f32.mrf.mxu0
  %v334 = vpop.f32.mrf.mxu0
  %v335 = vadd.f32 %v80, %v334
  %v336 = vpop.f32.mrf.mxu0
  %337 = vmatprep.mubr.bf16.mxu0 0
  %338 = vmatmul.mubr.bf16.gmra.mxu0 %v203
  %v339 = vpop.f32.mrf.mxu0
  %v340 = vadd.f32 %v80, %v339
  %v341 = vpop.f32.mrf.mxu0
  %v342 = vpop.f32.mrf.mxu0
  %v343 = vadd.f32 %v80, %v342
  %v344 = vpop.f32.mrf.mxu0
  %345 = vmatprep.mubr.bf16.mxu0 0
  %346 = vmatmul.mubr.bf16.gmra.mxu0 %v206
  %v347 = vpop.f32.mrf.mxu0
  %v348 = vadd.f32 %v80, %v347
  %v349 = vpop.f32.mrf.mxu0
  %v350 = vpop.f32.mrf.mxu0
  %v351 = vadd.f32 %v80, %v350
  %v352 = vpop.f32.mrf.mxu0
  %353 = vmatprep.mubr.bf16.mxu0 0
  %354 = vmatmul.mubr.bf16.gmra.mxu0 %v209
  %v355 = vpop.f32.mrf.mxu0
  %v356 = vadd.f32 %v80, %v355
  %v357 = vpop.f32.mrf.mxu0
  %v358 = vpop.f32.mrf.mxu0
  %v359 = vadd.f32 %v80, %v358
  %v360 = vpop.f32.mrf.mxu0
  %361 = vmatprep.mubr.bf16.mxu0 0
  %362 = vmatmul.mubr.bf16.gmra.mxu0 %v212
  %v363 = vpop.f32.mrf.mxu0
  %v364 = vadd.f32 %v80, %v363
  %v365 = vpop.f32.mrf.mxu0
  %v366 = vpop.f32.mrf.mxu0
  %v367 = vadd.f32 %v80, %v366
  %v368 = vpop.f32.mrf.mxu0
  %369 = vmatprep.mubr.bf16.mxu0 0
  %370 = vmatmul.mubr.bf16.gmra.mxu0 %v215
  %v371 = vpop.f32.mrf.mxu0
  %v372 = vadd.f32 %v80, %v371
  %v373 = vpop.f32.mrf.mxu0
  %v374 = vpop.f32.mrf.mxu0
  %v375 = vadd.f32 %v80, %v374
  %v376 = vpop.f32.mrf.mxu0
  %377 = vdwg.mxu0
  %v378 = vtanh.pop %v252
  %v379 = vtanh.pop %v255
  %v380 = vtanh.pop %v260
  %v381 = vtanh.pop %v263
  %v382 = vtanh.pop %v268
  %v383 = vtanh.pop %v271
  %v384 = vtanh.pop %v276
  %v385 = vtanh.pop %v279
  %v386 = vtanh.pop %v284
  %v387 = vtanh.pop %v287
  %v388 = vtanh.pop %v292
  %v389 = vtanh.pop %v295
  %v390 = vtanh.pop %v300
  %v391 = vtanh.pop %v303
  %v392 = vtanh.pop %v308
  %v393 = vtanh.pop %v311
  %v394 = vtanh.pop %v316
  %v395 = vtanh.pop %v319
  %v396 = vtanh.pop %v324
  %v397 = vtanh.pop %v327
  %v398 = vtanh.pop %v332
  %v399 = vtanh.pop %v335
  %v400 = vtanh.pop %v340
  %v401 = vtanh.pop %v343
  %v402 = vtanh.pop %v348
  %v403 = vtanh.pop %v351
  %v404 = vtanh.pop %v356
  %v405 = vtanh.pop %v359
  %v406 = vtanh.pop %v364
  %v407 = vtanh.pop %v367
  %v408 = vtanh.pop %v372
  %v409 = vtanh.pop %v375
  %v410 = vpack.c.bf16 %v379, %v378
  %v411 = vpack.c.bf16 %v381, %v380
  %v412 = vpack.c.bf16 %v383, %v382
  %v413 = vpack.c.bf16 %v385, %v384
  %v414 = vpack.c.bf16 %v387, %v386
  %v415 = vpack.c.bf16 %v389, %v388
  %v416 = vpack.c.bf16 %v391, %v390
  %v417 = vpack.c.bf16 %v393, %v392
  %v418 = vpack.c.bf16 %v395, %v394
  %v419 = vpack.c.bf16 %v397, %v396
  %v420 = vpack.c.bf16 %v399, %v398
  %v421 = vpack.c.bf16 %v401, %v400
  %v422 = vpack.c.bf16 %v403, %v402
  %v423 = vpack.c.bf16 %v405, %v404
  %v424 = vpack.c.bf16 %v407, %v406
  %v425 = vpack.c.bf16 %v409, %v408
  %v426 = vld [vmem:[%s4] sm:$0xf]
  %v427 = vld [vmem:[%s4 + $0x4] sm:$0xf]
  %v428 = vld [vmem:[%s4 + $0x8] sm:$0xf]
  %v429 = vld [vmem:[%s4 + $0xc] sm:$0xf]
  %v430 = vld [vmem:[%s4 + $0x10] sm:$0xf]
  %v431 = vld [vmem:[%s4 + $0x14] sm:$0xf]
  %v432 = vld [vmem:[%s4 + $0x18] sm:$0xf]
  %v433 = vld [vmem:[%s4 + $0x1c] sm:$0xf]
  %v434 = vld [vmem:[%s4 + $0x20] sm:$0xf]
  %v435 = vld [vmem:[%s4 + $0x24] sm:$0xf]
  %v436 = vld [vmem:[%s4 + $0x28] sm:$0xf]
  %v437 = vld [vmem:[%s4 + $0x2c] sm:$0xf]
  %v438 = vld [vmem:[%s4 + $0x30] sm:$0xf]
  %v439 = vld [vmem:[%s4 + $0x34] sm:$0xf]
  %v440 = vld [vmem:[%s4 + $0x38] sm:$0xf]
  %v441 = vld [vmem:[%s4 + $0x3c] sm:$0xf]
  %v442 = vld [vmem:[%s5] sm:$0x1]
  %v444 = vlaneseq
  %v445 = vshrl.u32 %v444, 7
  %v446 = vsub.s32 0, %v445
  %v447 = vrot.slane %v442, %v446
  %v465 = vunpack.c.l.b16 %v426
  %v466 = vunpack.c.l.b16 %v427
  %v467 = vunpack.c.l.b16 %v428
  %v468 = vunpack.c.l.b16 %v429
  %v469 = vunpack.c.l.b16 %v430
  %v470 = vunpack.c.l.b16 %v431
  %v471 = vunpack.c.l.b16 %v432
  %v472 = vunpack.c.l.b16 %v433
  %v473 = vunpack.c.l.b16 %v434
  %v474 = vunpack.c.l.b16 %v435
  %v475 = vunpack.c.l.b16 %v436
  %v476 = vunpack.c.l.b16 %v437
  %v477 = vunpack.c.l.b16 %v438
  %v478 = vunpack.c.l.b16 %v439
  %v479 = vunpack.c.l.b16 %v440
  %v480 = vunpack.c.l.b16 %v441
  %v481 = vpack.c.b16 %v466, %v465
  %v482 = vpack.c.b16 %v468, %v467
  %v483 = vpack.c.b16 %v470, %v469
  %v484 = vpack.c.b16 %v472, %v471
  %v485 = vpack.c.b16 %v474, %v473
  %v486 = vpack.c.b16 %v476, %v475
  %v487 = vpack.c.b16 %v478, %v477
  %v488 = vpack.c.b16 %v480, %v479
  %497 = vmatprep.subr.bf16.mxu0 0
  %498 = vmatpush1.bf16.msra.mxu0 %v488
  %499 = vmatprep.subr.bf16.mxu0 0
  %500 = vmatpush1.bf16.msra.mxu0 %v487
  %501 = vmatprep.subr.bf16.mxu0 0
  %502 = vmatpush1.bf16.msra.mxu0 %v486
  %503 = vmatprep.subr.bf16.mxu0 0
  %504 = vmatpush1.bf16.msra.mxu0 %v485
  %505 = vmatprep.subr.bf16.mxu0 0
  %506 = vmatpush1.bf16.msra.mxu0 %v484
  %507 = vmatprep.subr.bf16.mxu0 0
  %508 = vmatpush1.bf16.msra.mxu0 %v483
  %509 = vmatprep.subr.bf16.mxu0 0
  %510 = vmatpush1.bf16.msra.mxu0 %v482
  %511 = vmatprep.subr.bf16.mxu0 0
  %512 = vmatpush1.bf16.msra.mxu0 %v481
  %513 = vmatprep.subr.bf16.mxu0 0
  %514 = vmatpush2.bf16.msra.mxu0 0
  %515 = vmatprep.subr.bf16.mxu0 0
  %516 = vmatpush2.bf16.msra.mxu0 0
  %517 = vmatprep.subr.bf16.mxu0 0
  %518 = vmatpush2.bf16.msra.mxu0 0
  %519 = vmatprep.subr.bf16.mxu0 0
  %520 = vmatpush2.bf16.msra.mxu0 0
  %521 = vmatprep.subr.bf16.mxu0 0
  %522 = vmatpush2.bf16.msra.mxu0 0
  %523 = vmatprep.subr.bf16.mxu0 0
  %524 = vmatpush2.bf16.msra.mxu0 0
  %525 = vmatprep.subr.bf16.mxu0 0
  %526 = vmatpush2.bf16.msra.mxu0 0
  %527 = vmatprep.subr.bf16.mxu0 0
  %528 = vmatpush2.bf16.msra.mxu0 0
  %529 = vmatprep.mubr.bf16.mxu0 0
  %530 = vmatmul.mubr.bf16.gmra.mxu0 %v410
  %v531 = vpop.f32.mrf.mxu0
  %v532 = vadd.f32 %v447, %v531
  %v533 = vpop.f32.mrf.mxu0
  %v534 = vpop.f32.mrf.mxu0
  %v535 = vadd.f32 %v447, %v534
  %v536 = vpop.f32.mrf.mxu0
  %537 = vmatprep.mubr.bf16.mxu0 0
  %538 = vmatmul.mubr.bf16.gmra.mxu0 %v411
  %v539 = vpop.f32.mrf.mxu0
  %v540 = vadd.f32 %v447, %v539
  %v541 = vpop.f32.mrf.mxu0
  %v542 = vpop.f32.mrf.mxu0
  %v543 = vadd.f32 %v447, %v542
  %v544 = vpop.f32.mrf.mxu0
  %545 = vmatprep.mubr.bf16.mxu0 0
  %546 = vmatmul.mubr.bf16.gmra.mxu0 %v412
  %v547 = vpop.f32.mrf.mxu0
  %v548 = vadd.f32 %v447, %v547
  %v549 = vpop.f32.mrf.mxu0
  %v550 = vpop.f32.mrf.mxu0
  %v551 = vadd.f32 %v447, %v550
  %v552 = vpop.f32.mrf.mxu0
  %553 = vmatprep.mubr.bf16.mxu0 0
  %554 = vmatmul.mubr.bf16.gmra.mxu0 %v413
  %v555 = vpop.f32.mrf.mxu0
  %v556 = vadd.f32 %v447, %v555
  %v557 = vpop.f32.mrf.mxu0
  %v558 = vpop.f32.mrf.mxu0
  %v559 = vadd.f32 %v447, %v558
  %v560 = vpop.f32.mrf.mxu0
  %561 = vmatprep.mubr.bf16.mxu0 0
  %562 = vmatmul.mubr.bf16.gmra.mxu0 %v414
  %v563 = vpop.f32.mrf.mxu0
  %v564 = vadd.f32 %v447, %v563
  %v565 = vpop.f32.mrf.mxu0
  %v566 = vpop.f32.mrf.mxu0
  %v567 = vadd.f32 %v447, %v566
  %v568 = vpop.f32.mrf.mxu0
  %569 = vmatprep.mubr.bf16.mxu0 0
  %570 = vmatmul.mubr.bf16.gmra.mxu0 %v415
  %v571 = vpop.f32.mrf.mxu0
  %v572 = vadd.f32 %v447, %v571
  %v573 = vpop.f32.mrf.mxu0
  %v574 = vpop.f32.mrf.mxu0
  %v575 = vadd.f32 %v447, %v574
  %v576 = vpop.f32.mrf.mxu0
  %577 = vmatprep.mubr.bf16.mxu0 0
  %578 = vmatmul.mubr.bf16.gmra.mxu0 %v416
  %v579 = vpop.f32.mrf.mxu0
  %v580 = vadd.f32 %v447, %v579
  %v581 = vpop.f32.mrf.mxu0
  %v582 = vpop.f32.mrf.mxu0
  %v583 = vadd.f32 %v447, %v582
  %v584 = vpop.f32.mrf.mxu0
  %585 = vmatprep.mubr.bf16.mxu0 0
  %586 = vmatmul.mubr.bf16.gmra.mxu0 %v417
  %v587 = vpop.f32.mrf.mxu0
  %v588 = vadd.f32 %v447, %v587
  %v589 = vpop.f32.mrf.mxu0
  %v590 = vpop.f32.mrf.mxu0
  %v591 = vadd.f32 %v447, %v590
  %v592 = vpop.f32.mrf.mxu0
  %593 = vmatprep.mubr.bf16.mxu0 0
  %594 = vmatmul.mubr.bf16.gmra.mxu0 %v418
  %v595 = vpop.f32.mrf.mxu0
  %v596 = vadd.f32 %v447, %v595
  %v597 = vpop.f32.mrf.mxu0
  %v598 = vpop.f32.mrf.mxu0
  %v599 = vadd.f32 %v447, %v598
  %v600 = vpop.f32.mrf.mxu0
  %601 = vmatprep.mubr.bf16.mxu0 0
  %602 = vmatmul.mubr.bf16.gmra.mxu0 %v419
  %v603 = vpop.f32.mrf.mxu0
  %v604 = vadd.f32 %v447, %v603
  %v605 = vpop.f32.mrf.mxu0
  %v606 = vpop.f32.mrf.mxu0
  %v607 = vadd.f32 %v447, %v606
  %v608 = vpop.f32.mrf.mxu0
  %609 = vmatprep.mubr.bf16.mxu0 0
  %610 = vmatmul.mubr.bf16.gmra.mxu0 %v420
  %v611 = vpop.f32.mrf.mxu0
  %v612 = vadd.f32 %v447, %v611
  %v613 = vpop.f32.mrf.mxu0
  %v614 = vpop.f32.mrf.mxu0
  %v615 = vadd.f32 %v447, %v614
  %v616 = vpop.f32.mrf.mxu0
  %617 = vmatprep.mubr.bf16.mxu0 0
  %618 = vmatmul.mubr.bf16.gmra.mxu0 %v421
  %v619 = vpop.f32.mrf.mxu0
  %v620 = vadd.f32 %v447, %v619
  %v621 = vpop.f32.mrf.mxu0
  %v622 = vpop.f32.mrf.mxu0
  %v623 = vadd.f32 %v447, %v622
  %v624 = vpop.f32.mrf.mxu0
  %625 = vmatprep.mubr.bf16.mxu0 0
  %626 = vmatmul.mubr.bf16.gmra.mxu0 %v422
  %v627 = vpop.f32.mrf.mxu0
  %v628 = vadd.f32 %v447, %v627
  %v629 = vpop.f32.mrf.mxu0
  %v630 = vpop.f32.mrf.mxu0
  %v631 = vadd.f32 %v447, %v630
  %v632 = vpop.f32.mrf.mxu0
  %633 = vmatprep.mubr.bf16.mxu0 0
  %634 = vmatmul.mubr.bf16.gmra.mxu0 %v423
  %v635 = vpop.f32.mrf.mxu0
  %v636 = vadd.f32 %v447, %v635
  %v637 = vpop.f32.mrf.mxu0
  %v638 = vpop.f32.mrf.mxu0
  %v639 = vadd.f32 %v447, %v638
  %v640 = vpop.f32.mrf.mxu0
  %641 = vmatprep.mubr.bf16.mxu0 0
  %642 = vmatmul.mubr.bf16.gmra.mxu0 %v424
  %v643 = vpop.f32.mrf.mxu0
  %v644 = vadd.f32 %v447, %v643
  %v645 = vpop.f32.mrf.mxu0
  %v646 = vpop.f32.mrf.mxu0
  %v647 = vadd.f32 %v447, %v646
  %v648 = vpop.f32.mrf.mxu0
  %649 = vmatprep.mubr.bf16.mxu0 0
  %650 = vmatmul.mubr.bf16.gmra.mxu0 %v425
  %v651 = vpop.f32.mrf.mxu0
  %v652 = vadd.f32 %v447, %v651
  %v653 = vpop.f32.mrf.mxu0
  %v654 = vpop.f32.mrf.mxu0
  %v655 = vadd.f32 %v447, %v654
  %v656 = vpop.f32.mrf.mxu0
  %657 = vdwg.mxu0
  %v658 = vtanh.pop %v532
  %v659 = vtanh.pop %v535
  %v660 = vtanh.pop %v540
  %v661 = vtanh.pop %v543
  %v662 = vtanh.pop %v548
  %v663 = vtanh.pop %v551
  %v664 = vtanh.pop %v556
  %v665 = vtanh.pop %v559
  %v666 = vtanh.pop %v564
  %v667 = vtanh.pop %v567
  %v668 = vtanh.pop %v572
  %v669 = vtanh.pop %v575
  %v670 = vtanh.pop %v580
  %v671 = vtanh.pop %v583
  %v672 = vtanh.pop %v588
  %v673 = vtanh.pop %v591
  %v674 = vtanh.pop %v596
  %v675 = vtanh.pop %v599
  %v676 = vtanh.pop %v604
  %v677 = vtanh.pop %v607
  %v678 = vtanh.pop %v612
  %v679 = vtanh.pop %v615
  %v680 = vtanh.pop %v620
  %v681 = vtanh.pop %v623
  %v682 = vtanh.pop %v628
  %v683 = vtanh.pop %v631
  %v684 = vtanh.pop %v636
  %v685 = vtanh.pop %v639
  %v686 = vtanh.pop %v644
  %v687 = vtanh.pop %v647
  %v688 = vtanh.pop %v652
  %v689 = vtanh.pop %v655
  %v690 = vpack.c.bf16 %v659, %v658
  %v691 = vpack.c.bf16 %v661, %v660
  %v692 = vpack.c.bf16 %v663, %v662
  %v693 = vpack.c.bf16 %v665, %v664
  %v694 = vpack.c.bf16 %v667, %v666
  %v695 = vpack.c.bf16 %v669, %v668
  %v696 = vpack.c.bf16 %v671, %v670
  %v697 = vpack.c.bf16 %v673, %v672
  %v698 = vpack.c.bf16 %v675, %v674
  %v699 = vpack.c.bf16 %v677, %v676
  %v700 = vpack.c.bf16 %v679, %v678
  %v701 = vpack.c.bf16 %v681, %v680
  %v702 = vpack.c.bf16 %v683, %v682
  %v703 = vpack.c.bf16 %v685, %v684
  %v704 = vpack.c.bf16 %v687, %v686
  %v705 = vpack.c.bf16 %v689, %v688
  %v706 = vld [vmem:[%s6] sm:$0xf]
  %v707 = vld [vmem:[%s6 + $0x4] sm:$0xf]
  %v708 = vld [vmem:[%s6 + $0x8] sm:$0xf]
  %v709 = vld [vmem:[%s6 + $0xc] sm:$0xf]
  %v710 = vld [vmem:[%s6 + $0x10] sm:$0xf]
  %v711 = vld [vmem:[%s6 + $0x14] sm:$0xf]
  %v712 = vld [vmem:[%s6 + $0x18] sm:$0xf]
  %v713 = vld [vmem:[%s6 + $0x1c] sm:$0xf]
  %v714 = vld [vmem:[%s6 + $0x20] sm:$0xf]
  %v715 = vld [vmem:[%s6 + $0x24] sm:$0xf]
  %v716 = vld [vmem:[%s6 + $0x28] sm:$0xf]
  %v717 = vld [vmem:[%s6 + $0x2c] sm:$0xf]
  %v718 = vld [vmem:[%s6 + $0x30] sm:$0xf]
  %v719 = vld [vmem:[%s6 + $0x34] sm:$0xf]
  %v720 = vld [vmem:[%s6 + $0x38] sm:$0xf]
  %v721 = vld [vmem:[%s6 + $0x3c] sm:$0xf]
  %v722 = vld [vmem:[%s7] sm:$0x1]
  %v724 = vlaneseq
  %v725 = vshrl.u32 %v724, 7
  %v726 = vsub.s32 0, %v725
  %v727 = vrot.slane %v722, %v726
  %v745 = vunpack.c.l.b16 %v706
  %v746 = vunpack.c.l.b16 %v707
  %v747 = vunpack.c.l.b16 %v708
  %v748 = vunpack.c.l.b16 %v709
  %v749 = vunpack.c.l.b16 %v710
  %v750 = vunpack.c.l.b16 %v711
  %v751 = vunpack.c.l.b16 %v712
  %v752 = vunpack.c.l.b16 %v713
  %v753 = vunpack.c.l.b16 %v714
  %v754 = vunpack.c.l.b16 %v715
  %v755 = vunpack.c.l.b16 %v716
  %v756 = vunpack.c.l.b16 %v717
  %v757 = vunpack.c.l.b16 %v718
  %v758 = vunpack.c.l.b16 %v719
  %v759 = vunpack.c.l.b16 %v720
  %v760 = vunpack.c.l.b16 %v721
  %v761 = vpack.c.b16 %v746, %v745
  %v762 = vpack.c.b16 %v748, %v747
  %v763 = vpack.c.b16 %v750, %v749
  %v764 = vpack.c.b16 %v752, %v751
  %v765 = vpack.c.b16 %v754, %v753
  %v766 = vpack.c.b16 %v756, %v755
  %v767 = vpack.c.b16 %v758, %v757
  %v768 = vpack.c.b16 %v760, %v759
  %777 = vmatprep.subr.bf16.mxu0 0
  %778 = vmatpush1.bf16.msra.mxu0 %v768
  %779 = vmatprep.subr.bf16.mxu0 0
  %780 = vmatpush1.bf16.msra.mxu0 %v767
  %781 = vmatprep.subr.bf16.mxu0 0
  %782 = vmatpush1.bf16.msra.mxu0 %v766
  %783 = vmatprep.subr.bf16.mxu0 0
  %784 = vmatpush1.bf16.msra.mxu0 %v765
  %785 = vmatprep.subr.bf16.mxu0 0
  %786 = vmatpush1.bf16.msra.mxu0 %v764
  %787 = vmatprep.subr.bf16.mxu0 0
  %788 = vmatpush1.bf16.msra.mxu0 %v763
  %789 = vmatprep.subr.bf16.mxu0 0
  %790 = vmatpush1.bf16.msra.mxu0 %v762
  %791 = vmatprep.subr.bf16.mxu0 0
  %792 = vmatpush1.bf16.msra.mxu0 %v761
  %793 = vmatprep.subr.bf16.mxu0 0
  %794 = vmatpush2.bf16.msra.mxu0 0
  %795 = vmatprep.subr.bf16.mxu0 0
  %796 = vmatpush2.bf16.msra.mxu0 0
  %797 = vmatprep.subr.bf16.mxu0 0
  %798 = vmatpush2.bf16.msra.mxu0 0
  %799 = vmatprep.subr.bf16.mxu0 0
  %800 = vmatpush2.bf16.msra.mxu0 0
  %801 = vmatprep.subr.bf16.mxu0 0
  %802 = vmatpush2.bf16.msra.mxu0 0
  %803 = vmatprep.subr.bf16.mxu0 0
  %804 = vmatpush2.bf16.msra.mxu0 0
  %805 = vmatprep.subr.bf16.mxu0 0
  %806 = vmatpush2.bf16.msra.mxu0 0
  %807 = vmatprep.subr.bf16.mxu0 0
  %808 = vmatpush2.bf16.msra.mxu0 0
  %809 = vmatprep.mubr.bf16.mxu0 0
  %810 = vmatmul.mubr.bf16.gmra.mxu0 %v690
  %v811 = vpop.f32.mrf.mxu0
  %v812 = vadd.f32 %v727, %v811
  %v813 = vpop.f32.mrf.mxu0
  %v814 = vpop.f32.mrf.mxu0
  %v815 = vadd.f32 %v727, %v814
  %v816 = vpop.f32.mrf.mxu0
  %817 = vmatprep.mubr.bf16.mxu0 0
  %818 = vmatmul.mubr.bf16.gmra.mxu0 %v691
  %v819 = vpop.f32.mrf.mxu0
  %v820 = vadd.f32 %v727, %v819
  %v821 = vpop.f32.mrf.mxu0
  %v822 = vpop.f32.mrf.mxu0
  %v823 = vadd.f32 %v727, %v822
  %v824 = vpop.f32.mrf.mxu0
  %825 = vmatprep.mubr.bf16.mxu0 0
  %826 = vmatmul.mubr.bf16.gmra.mxu0 %v692
  %v827 = vpop.f32.mrf.mxu0
  %v828 = vadd.f32 %v727, %v827
  %v829 = vpop.f32.mrf.mxu0
  %v830 = vpop.f32.mrf.mxu0
  %v831 = vadd.f32 %v727, %v830
  %v832 = vpop.f32.mrf.mxu0
  %833 = vmatprep.mubr.bf16.mxu0 0
  %834 = vmatmul.mubr.bf16.gmra.mxu0 %v693
  %v835 = vpop.f32.mrf.mxu0
  %v836 = vadd.f32 %v727, %v835
  %v837 = vpop.f32.mrf.mxu0
  %v838 = vpop.f32.mrf.mxu0
  %v839 = vadd.f32 %v727, %v838
  %v840 = vpop.f32.mrf.mxu0
  %841 = vmatprep.mubr.bf16.mxu0 0
  %842 = vmatmul.mubr.bf16.gmra.mxu0 %v694
  %v843 = vpop.f32.mrf.mxu0
  %v844 = vadd.f32 %v727, %v843
  %v845 = vpop.f32.mrf.mxu0
  %v846 = vpop.f32.mrf.mxu0
  %v847 = vadd.f32 %v727, %v846
  %v848 = vpop.f32.mrf.mxu0
  %849 = vmatprep.mubr.bf16.mxu0 0
  %850 = vmatmul.mubr.bf16.gmra.mxu0 %v695
  %v851 = vpop.f32.mrf.mxu0
  %v852 = vadd.f32 %v727, %v851
  %v853 = vpop.f32.mrf.mxu0
  %v854 = vpop.f32.mrf.mxu0
  %v855 = vadd.f32 %v727, %v854
  %v856 = vpop.f32.mrf.mxu0
  %857 = vmatprep.mubr.bf16.mxu0 0
  %858 = vmatmul.mubr.bf16.gmra.mxu0 %v696
  %v859 = vpop.f32.mrf.mxu0
  %v860 = vadd.f32 %v727, %v859
  %v861 = vpop.f32.mrf.mxu0
  %v862 = vpop.f32.mrf.mxu0
  %v863 = vadd.f32 %v727, %v862
  %v864 = vpop.f32.mrf.mxu0
  %865 = vmatprep.mubr.bf16.mxu0 0
  %866 = vmatmul.mubr.bf16.gmra.mxu0 %v697
  %v867 = vpop.f32.mrf.mxu0
  %v868 = vadd.f32 %v727, %v867
  %v869 = vpop.f32.mrf.mxu0
  %v870 = vpop.f32.mrf.mxu0
  %v871 = vadd.f32 %v727, %v870
  %v872 = vpop.f32.mrf.mxu0
  %873 = vmatprep.mubr.bf16.mxu0 0
  %874 = vmatmul.mubr.bf16.gmra.mxu0 %v698
  %v875 = vpop.f32.mrf.mxu0
  %v876 = vadd.f32 %v727, %v875
  %v877 = vpop.f32.mrf.mxu0
  %v878 = vpop.f32.mrf.mxu0
  %v879 = vadd.f32 %v727, %v878
  %v880 = vpop.f32.mrf.mxu0
  %881 = vmatprep.mubr.bf16.mxu0 0
  %882 = vmatmul.mubr.bf16.gmra.mxu0 %v699
  %v883 = vpop.f32.mrf.mxu0
  %v884 = vadd.f32 %v727, %v883
  %v885 = vpop.f32.mrf.mxu0
  %v886 = vpop.f32.mrf.mxu0
  %v887 = vadd.f32 %v727, %v886
  %v888 = vpop.f32.mrf.mxu0
  %889 = vmatprep.mubr.bf16.mxu0 0
  %890 = vmatmul.mubr.bf16.gmra.mxu0 %v700
  %v891 = vpop.f32.mrf.mxu0
  %v892 = vadd.f32 %v727, %v891
  %v893 = vpop.f32.mrf.mxu0
  %v894 = vpop.f32.mrf.mxu0
  %v895 = vadd.f32 %v727, %v894
  %v896 = vpop.f32.mrf.mxu0
  %897 = vmatprep.mubr.bf16.mxu0 0
  %898 = vmatmul.mubr.bf16.gmra.mxu0 %v701
  %v899 = vpop.f32.mrf.mxu0
  %v900 = vadd.f32 %v727, %v899
  %v901 = vpop.f32.mrf.mxu0
  %v902 = vpop.f32.mrf.mxu0
  %v903 = vadd.f32 %v727, %v902
  %v904 = vpop.f32.mrf.mxu0
  %905 = vmatprep.mubr.bf16.mxu0 0
  %906 = vmatmul.mubr.bf16.gmra.mxu0 %v702
  %v907 = vpop.f32.mrf.mxu0
  %v908 = vadd.f32 %v727, %v907
  %v909 = vpop.f32.mrf.mxu0
  %v910 = vpop.f32.mrf.mxu0
  %v911 = vadd.f32 %v727, %v910
  %v912 = vpop.f32.mrf.mxu0
  %913 = vmatprep.mubr.bf16.mxu0 0
  %914 = vmatmul.mubr.bf16.gmra.mxu0 %v703
  %v915 = vpop.f32.mrf.mxu0
  %v916 = vadd.f32 %v727, %v915
  %v917 = vpop.f32.mrf.mxu0
  %v918 = vpop.f32.mrf.mxu0
  %v919 = vadd.f32 %v727, %v918
  %v920 = vpop.f32.mrf.mxu0
  %921 = vmatprep.mubr.bf16.mxu0 0
  %922 = vmatmul.mubr.bf16.gmra.mxu0 %v704
  %v923 = vpop.f32.mrf.mxu0
  %v924 = vadd.f32 %v727, %v923
  %v925 = vpop.f32.mrf.mxu0
  %v926 = vpop.f32.mrf.mxu0
  %v927 = vadd.f32 %v727, %v926
  %v928 = vpop.f32.mrf.mxu0
  %929 = vmatprep.mubr.bf16.mxu0 0
  %930 = vmatmul.mubr.bf16.gmra.mxu0 %v705
  %v931 = vpop.f32.mrf.mxu0
  %v932 = vadd.f32 %v727, %v931
  %v933 = vpop.f32.mrf.mxu0
  %v934 = vpop.f32.mrf.mxu0
  %v935 = vadd.f32 %v727, %v934
  %v936 = vpop.f32.mrf.mxu0
  %937 = vdwg.mxu0
  %v938 = vld [vmem:[%s8] sm:$0x1]
  %v940 = vlaneseq
  %v941 = vshrl.u32 %v940, 7
  %v942 = vsub.s32 0, %v941
  %v943 = vrot.slane %v938, %v942
  %v945 = vmul.f32 %v658, %v943
  %v946 = vmul.f32 %v659, %v943
  %v947 = vmul.f32 %v660, %v943
  %v948 = vmul.f32 %v661, %v943
  %v949 = vmul.f32 %v662, %v943
  %v950 = vmul.f32 %v663, %v943
  %v951 = vmul.f32 %v664, %v943
  %v952 = vmul.f32 %v665, %v943
  %v953 = vmul.f32 %v666, %v943
  %v954 = vmul.f32 %v667, %v943
  %v955 = vmul.f32 %v668, %v943
  %v956 = vmul.f32 %v669, %v943
  %v957 = vmul.f32 %v670, %v943
  %v958 = vmul.f32 %v671, %v943
  %v959 = vmul.f32 %v672, %v943
  %v960 = vmul.f32 %v673, %v943
  %v961 = vmul.f32 %v674, %v943
  %v962 = vmul.f32 %v675, %v943
  %v963 = vmul.f32 %v676, %v943
  %v964 = vmul.f32 %v677, %v943
  %v965 = vmul.f32 %v678, %v943
  %v966 = vmul.f32 %v679, %v943
  %v967 = vmul.f32 %v680, %v943
  %v968 = vmul.f32 %v681, %v943
  %v969 = vmul.f32 %v682, %v943
  %v970 = vmul.f32 %v683, %v943
  %v971 = vmul.f32 %v684, %v943
  %v972 = vmul.f32 %v685, %v943
  %v973 = vmul.f32 %v686, %v943
  %v974 = vmul.f32 %v687, %v943
  %v975 = vmul.f32 %v688, %v943
  %v976 = vmul.f32 %v689, %v943
  %977 = vadd.xlane.f32.xlu0 %v945
  %v978 = vpop.xlane.xlu0 %977
  %979 = vadd.xlane.f32.xlu0 %v946
  %v980 = vpop.xlane.xlu0 %979
  %981 = vadd.xlane.f32.xlu0 %v947
  %v982 = vpop.xlane.xlu0 %981
  %983 = vadd.xlane.f32.xlu0 %v948
  %v984 = vpop.xlane.xlu0 %983
  %985 = vadd.xlane.f32.xlu0 %v949
  %v986 = vpop.xlane.xlu0 %985
  %987 = vadd.xlane.f32.xlu0 %v950
  %v988 = vpop.xlane.xlu0 %987
  %989 = vadd.xlane.f32.xlu0 %v951
  %v990 = vpop.xlane.xlu0 %989
  %991 = vadd.xlane.f32.xlu0 %v952
  %v992 = vpop.xlane.xlu0 %991
  %993 = vadd.xlane.f32.xlu0 %v953
  %v994 = vpop.xlane.xlu0 %993
  %995 = vadd.xlane.f32.xlu0 %v954
  %v996 = vpop.xlane.xlu0 %995
  %997 = vadd.xlane.f32.xlu0 %v955
  %v998 = vpop.xlane.xlu0 %997
  %999 = vadd.xlane.f32.xlu0 %v956
  %v1000 = vpop.xlane.xlu0 %999
  %1001 = vadd.xlane.f32.xlu0 %v957
  %v1002 = vpop.xlane.xlu0 %1001
  %1003 = vadd.xlane.f32.xlu0 %v958
  %v1004 = vpop.xlane.xlu0 %1003
  %1005 = vadd.xlane.f32.xlu0 %v959
  %v1006 = vpop.xlane.xlu0 %1005
  %1007 = vadd.xlane.f32.xlu0 %v960
  %v1008 = vpop.xlane.xlu0 %1007
  %1009 = vadd.xlane.f32.xlu0 %v961
  %v1010 = vpop.xlane.xlu0 %1009
  %1011 = vadd.xlane.f32.xlu0 %v962
  %v1012 = vpop.xlane.xlu0 %1011
  %1013 = vadd.xlane.f32.xlu0 %v963
  %v1014 = vpop.xlane.xlu0 %1013
  %1015 = vadd.xlane.f32.xlu0 %v964
  %v1016 = vpop.xlane.xlu0 %1015
  %1017 = vadd.xlane.f32.xlu0 %v965
  %v1018 = vpop.xlane.xlu0 %1017
  %1019 = vadd.xlane.f32.xlu0 %v966
  %v1020 = vpop.xlane.xlu0 %1019
  %1021 = vadd.xlane.f32.xlu0 %v967
  %v1022 = vpop.xlane.xlu0 %1021
  %1023 = vadd.xlane.f32.xlu0 %v968
  %v1024 = vpop.xlane.xlu0 %1023
  %1025 = vadd.xlane.f32.xlu0 %v969
  %v1026 = vpop.xlane.xlu0 %1025
  %1027 = vadd.xlane.f32.xlu0 %v970
  %v1028 = vpop.xlane.xlu0 %1027
  %1029 = vadd.xlane.f32.xlu0 %v971
  %v1030 = vpop.xlane.xlu0 %1029
  %1031 = vadd.xlane.f32.xlu0 %v972
  %v1032 = vpop.xlane.xlu0 %1031
  %1033 = vadd.xlane.f32.xlu0 %v973
  %v1034 = vpop.xlane.xlu0 %1033
  %1035 = vadd.xlane.f32.xlu0 %v974
  %v1036 = vpop.xlane.xlu0 %1035
  %1037 = vadd.xlane.f32.xlu0 %v975
  %v1038 = vpop.xlane.xlu0 %1037
  %1039 = vadd.xlane.f32.xlu0 %v976
  %v1040 = vpop.xlane.xlu0 %1039
  %v1041 = vld [vmem:[#allocation2] sm:$0x1]
  %v1043 = vlaneseq
  %v1044 = vshrl.u32 %v1043, 7
  %v1045 = vsub.s32 0, %v1044
  %v1046 = vrot.slane %v1041, %v1045
  %v1048 = vadd.f32 %v978, %v1046
  %v1049 = vadd.f32 %v980, %v1046
  %v1050 = vadd.f32 %v982, %v1046
  %v1051 = vadd.f32 %v984, %v1046
  %v1052 = vadd.f32 %v986, %v1046
  %v1053 = vadd.f32 %v988, %v1046
  %v1054 = vadd.f32 %v990, %v1046
  %v1055 = vadd.f32 %v992, %v1046
  %v1056 = vadd.f32 %v994, %v1046
  %v1057 = vadd.f32 %v996, %v1046
  %v1058 = vadd.f32 %v998, %v1046
  %v1059 = vadd.f32 %v1000, %v1046
  %v1060 = vadd.f32 %v1002, %v1046
  %v1061 = vadd.f32 %v1004, %v1046
  %v1062 = vadd.f32 %v1006, %v1046
  %v1063 = vadd.f32 %v1008, %v1046
  %v1064 = vadd.f32 %v1010, %v1046
  %v1065 = vadd.f32 %v1012, %v1046
  %v1066 = vadd.f32 %v1014, %v1046
  %v1067 = vadd.f32 %v1016, %v1046
  %v1068 = vadd.f32 %v1018, %v1046
  %v1069 = vadd.f32 %v1020, %v1046
  %v1070 = vadd.f32 %v1022, %v1046
  %v1071 = vadd.f32 %v1024, %v1046
  %v1072 = vadd.f32 %v1026, %v1046
  %v1073 = vadd.f32 %v1028, %v1046
  %v1074 = vadd.f32 %v1030, %v1046
  %v1075 = vadd.f32 %v1032, %v1046
  %v1076 = vadd.f32 %v1034, %v1046
  %v1077 = vadd.f32 %v1036, %v1046
  %v1078 = vadd.f32 %v1038, %v1046
  %v1079 = vadd.f32 %v1040, %v1046
  %vm1080 = vcmask 64512
  %v1081 = vsel %vm1080, %v812, -inf
  %1082 = vmax.xlane.f32.xlu0 %v1081
  %v1083 = vpop.xlane.xlu0 %1082
  %v1084 = vsel %vm1080, %v815, -inf
  %1085 = vmax.xlane.f32.xlu0 %v1084
  %v1086 = vpop.xlane.xlu0 %1085
  %v1087 = vsel %vm1080, %v820, -inf
  %1088 = vmax.xlane.f32.xlu0 %v1087
  %v1089 = vpop.xlane.xlu0 %1088
  %v1090 = vsel %vm1080, %v823, -inf
  %1091 = vmax.xlane.f32.xlu0 %v1090
  %v1092 = vpop.xlane.xlu0 %1091
  %v1093 = vsel %vm1080, %v828, -inf
  %1094 = vmax.xlane.f32.xlu0 %v1093
  %v1095 = vpop.xlane.xlu0 %1094
  %v1096 = vsel %vm1080, %v831, -inf
  %1097 = vmax.xlane.f32.xlu0 %v1096
  %v1098 = vpop.xlane.xlu0 %1097
  %v1099 = vsel %vm1080, %v836, -inf
  %1100 = vmax.xlane.f32.xlu0 %v1099
  %v1101 = vpop.xlane.xlu0 %1100
  %v1102 = vsel %vm1080, %v839, -inf
  %1103 = vmax.xlane.f32.xlu0 %v1102
  %v1104 = vpop.xlane.xlu0 %1103
  %v1105 = vsel %vm1080, %v844, -inf
  %1106 = vmax.xlane.f32.xlu0 %v1105
  %v1107 = vpop.xlane.xlu0 %1106
  %v1108 = vsel %vm1080, %v847, -inf
  %1109 = vmax.xlane.f32.xlu0 %v1108
  %v1110 = vpop.xlane.xlu0 %1109
  %v1111 = vsel %vm1080, %v852, -inf
  %1112 = vmax.xlane.f32.xlu0 %v1111
  %v1113 = vpop.xlane.xlu0 %1112
  %v1114 = vsel %vm1080, %v855, -inf
  %1115 = vmax.xlane.f32.xlu0 %v1114
  %v1116 = vpop.xlane.xlu0 %1115
  %v1117 = vsel %vm1080, %v860, -inf
  %1118 = vmax.xlane.f32.xlu0 %v1117
  %v1119 = vpop.xlane.xlu0 %1118
  %v1120 = vsel %vm1080, %v863, -inf
  %1121 = vmax.xlane.f32.xlu0 %v1120
  %v1122 = vpop.xlane.xlu0 %1121
  %v1123 = vsel %vm1080, %v868, -inf
  %1124 = vmax.xlane.f32.xlu0 %v1123
  %v1125 = vpop.xlane.xlu0 %1124
  %v1126 = vsel %vm1080, %v871, -inf
  %1127 = vmax.xlane.f32.xlu0 %v1126
  %v1128 = vpop.xlane.xlu0 %1127
  %v1129 = vsel %vm1080, %v876, -inf
  %1130 = vmax.xlane.f32.xlu0 %v1129
  %v1131 = vpop.xlane.xlu0 %1130
  %v1132 = vsel %vm1080, %v879, -inf
  %1133 = vmax.xlane.f32.xlu0 %v1132
  %v1134 = vpop.xlane.xlu0 %1133
  %v1135 = vsel %vm1080, %v884, -inf
  %1136 = vmax.xlane.f32.xlu0 %v1135
  %v1137 = vpop.xlane.xlu0 %1136
  %v1138 = vsel %vm1080, %v887, -inf
  %1139 = vmax.xlane.f32.xlu0 %v1138
  %v1140 = vpop.xlane.xlu0 %1139
  %v1141 = vsel %vm1080, %v892, -inf
  %1142 = vmax.xlane.f32.xlu0 %v1141
  %v1143 = vpop.xlane.xlu0 %1142
  %v1144 = vsel %vm1080, %v895, -inf
  %1145 = vmax.xlane.f32.xlu0 %v1144
  %v1146 = vpop.xlane.xlu0 %1145
  %v1147 = vsel %vm1080, %v900, -inf
  %1148 = vmax.xlane.f32.xlu0 %v1147
  %v1149 = vpop.xlane.xlu0 %1148
  %v1150 = vsel %vm1080, %v903, -inf
  %1151 = vmax.xlane.f32.xlu0 %v1150
  %v1152 = vpop.xlane.xlu0 %1151
  %v1153 = vsel %vm1080, %v908, -inf
  %1154 = vmax.xlane.f32.xlu0 %v1153
  %v1155 = vpop.xlane.xlu0 %1154
  %v1156 = vsel %vm1080, %v911, -inf
  %1157 = vmax.xlane.f32.xlu0 %v1156
  %v1158 = vpop.xlane.xlu0 %1157
  %v1159 = vsel %vm1080, %v916, -inf
  %1160 = vmax.xlane.f32.xlu0 %v1159
  %v1161 = vpop.xlane.xlu0 %1160
  %v1162 = vsel %vm1080, %v919, -inf
  %1163 = vmax.xlane.f32.xlu0 %v1162
  %v1164 = vpop.xlane.xlu0 %1163
  %v1165 = vsel %vm1080, %v924, -inf
  %1166 = vmax.xlane.f32.xlu0 %v1165
  %v1167 = vpop.xlane.xlu0 %1166
  %v1168 = vsel %vm1080, %v927, -inf
  %1169 = vmax.xlane.f32.xlu0 %v1168
  %v1170 = vpop.xlane.xlu0 %1169
  %v1171 = vsel %vm1080, %v932, -inf
  %1172 = vmax.xlane.f32.xlu0 %v1171
  %v1173 = vpop.xlane.xlu0 %1172
  %v1174 = vsel %vm1080, %v935, -inf
  %1175 = vmax.xlane.f32.xlu0 %v1174
  %v1176 = vpop.xlane.xlu0 %1175
  %v1177 = vsub.f32 %v812, %v1083
  %v1178 = vsub.f32 %v815, %v1086
  %v1179 = vsub.f32 %v820, %v1089
  %v1180 = vsub.f32 %v823, %v1092
  %v1181 = vsub.f32 %v828, %v1095
  %v1182 = vsub.f32 %v831, %v1098
  %v1183 = vsub.f32 %v836, %v1101
  %v1184 = vsub.f32 %v839, %v1104
  %v1185 = vsub.f32 %v844, %v1107
  %v1186 = vsub.f32 %v847, %v1110
  %v1187 = vsub.f32 %v852, %v1113
  %v1188 = vsub.f32 %v855, %v1116
  %v1189 = vsub.f32 %v860, %v1119
  %v1190 = vsub.f32 %v863, %v1122
  %v1191 = vsub.f32 %v868, %v1125
  %v1192 = vsub.f32 %v871, %v1128
  %v1193 = vsub.f32 %v876, %v1131
  %v1194 = vsub.f32 %v879, %v1134
  %v1195 = vsub.f32 %v884, %v1137
  %v1196 = vsub.f32 %v887, %v1140
  %v1197 = vsub.f32 %v892, %v1143
  %v1198 = vsub.f32 %v895, %v1146
  %v1199 = vsub.f32 %v900, %v1149
  %v1200 = vsub.f32 %v903, %v1152
  %v1201 = vsub.f32 %v908, %v1155
  %v1202 = vsub.f32 %v911, %v1158
  %v1203 = vsub.f32 %v916, %v1161
  %v1204 = vsub.f32 %v919, %v1164
  %v1205 = vsub.f32 %v924, %v1167
  %v1206 = vsub.f32 %v927, %v1170
  %v1207 = vsub.f32 %v932, %v1173
  %v1208 = vsub.f32 %v935, %v1176
  %v1209 = vmul.f32 %v1177, 1.442695
  %v1210 = vpow.pop %v1209
  %v1211 = vmul.f32 %v1178, 1.442695
  %v1212 = vpow.pop %v1211
  %v1213 = vmul.f32 %v1179, 1.442695
  %v1214 = vpow.pop %v1213
  %v1215 = vmul.f32 %v1180, 1.442695
  %v1216 = vpow.pop %v1215
  %v1217 = vmul.f32 %v1181, 1.442695
  %v1218 = vpow.pop %v1217
  %v1219 = vmul.f32 %v1182, 1.442695
  %v1220 = vpow.pop %v1219
  %v1221 = vmul.f32 %v1183, 1.442695
  %v1222 = vpow.pop %v1221
  %v1223 = vmul.f32 %v1184, 1.442695
  %v1224 = vpow.pop %v1223
  %v1225 = vmul.f32 %v1185, 1.442695
  %v1226 = vpow.pop %v1225
  %v1227 = vmul.f32 %v1186, 1.442695
  %v1228 = vpow.pop %v1227
  %v1229 = vmul.f32 %v1187, 1.442695
  %v1230 = vpow.pop %v1229
  %v1231 = vmul.f32 %v1188, 1.442695
  %v1232 = vpow.pop %v1231
  %v1233 = vmul.f32 %v1189, 1.442695
  %v1234 = vpow.pop %v1233
  %v1235 = vmul.f32 %v1190, 1.442695
  %v1236 = vpow.pop %v1235
  %v1237 = vmul.f32 %v1191, 1.442695
  %v1238 = vpow.pop %v1237
  %v1239 = vmul.f32 %v1192, 1.442695
  %v1240 = vpow.pop %v1239
  %v1241 = vmul.f32 %v1193, 1.442695
  %v1242 = vpow.pop %v1241
  %v1243 = vmul.f32 %v1194, 1.442695
  %v1244 = vpow.pop %v1243
  %v1245 = vmul.f32 %v1195, 1.442695
  %v1246 = vpow.pop %v1245
  %v1247 = vmul.f32 %v1196, 1.442695
  %v1248 = vpow.pop %v1247
  %v1249 = vmul.f32 %v1197, 1.442695
  %v1250 = vpow.pop %v1249
  %v1251 = vmul.f32 %v1198, 1.442695
  %v1252 = vpow.pop %v1251
  %v1253 = vmul.f32 %v1199, 1.442695
  %v1254 = vpow.pop %v1253
  %v1255 = vmul.f32 %v1200, 1.442695
  %v1256 = vpow.pop %v1255
  %v1257 = vmul.f32 %v1201, 1.442695
  %v1258 = vpow.pop %v1257
  %v1259 = vmul.f32 %v1202, 1.442695
  %v1260 = vpow.pop %v1259
  %v1261 = vmul.f32 %v1203, 1.442695
  %v1262 = vpow.pop %v1261
  %v1263 = vmul.f32 %v1204, 1.442695
  %v1264 = vpow.pop %v1263
  %v1265 = vmul.f32 %v1205, 1.442695
  %v1266 = vpow.pop %v1265
  %v1267 = vmul.f32 %v1206, 1.442695
  %v1268 = vpow.pop %v1267
  %v1269 = vmul.f32 %v1207, 1.442695
  %v1270 = vpow.pop %v1269
  %v1271 = vmul.f32 %v1208, 1.442695
  %v1272 = vpow.pop %v1271
  %v1273 = vsel %vm1080, %v1210, 0.0
  %1274 = vadd.xlane.f32.xlu0 %v1273
  %v1275 = vpop.xlane.xlu0 %1274
  %v1276 = vsel %vm1080, %v1212, 0.0
  %1277 = vadd.xlane.f32.xlu0 %v1276
  %v1278 = vpop.xlane.xlu0 %1277
  %v1279 = vsel %vm1080, %v1214, 0.0
  %1280 = vadd.xlane.f32.xlu0 %v1279
  %v1281 = vpop.xlane.xlu0 %1280
  %v1282 = vsel %vm1080, %v1216, 0.0
  %1283 = vadd.xlane.f32.xlu0 %v1282
  %v1284 = vpop.xlane.xlu0 %1283
  %v1285 = vsel %vm1080, %v1218, 0.0
  %1286 = vadd.xlane.f32.xlu0 %v1285
  %v1287 = vpop.xlane.xlu0 %1286
  %v1288 = vsel %vm1080, %v1220, 0.0
  %1289 = vadd.xlane.f32.xlu0 %v1288
  %v1290 = vpop.xlane.xlu0 %1289
  %v1291 = vsel %vm1080, %v1222, 0.0
  %1292 = vadd.xlane.f32.xlu0 %v1291
  %v1293 = vpop.xlane.xlu0 %1292
  %v1294 = vsel %vm1080, %v1224, 0.0
  %1295 = vadd.xlane.f32.xlu0 %v1294
  %v1296 = vpop.xlane.xlu0 %1295
  %v1297 = vsel %vm1080, %v1226, 0.0
  %1298 = vadd.xlane.f32.xlu0 %v1297
  %v1299 = vpop.xlane.xlu0 %1298
  %v1300 = vsel %vm1080, %v1228, 0.0
  %1301 = vadd.xlane.f32.xlu0 %v1300
  %v1302 = vpop.xlane.xlu0 %1301
  %v1303 = vsel %vm1080, %v1230, 0.0
  %1304 = vadd.xlane.f32.xlu0 %v1303
  %v1305 = vpop.xlane.xlu0 %1304
  %v1306 = vsel %vm1080, %v1232, 0.0
  %1307 = vadd.xlane.f32.xlu0 %v1306
  %v1308 = vpop.xlane.xlu0 %1307
  %v1309 = vsel %vm1080, %v1234, 0.0
  %1310 = vadd.xlane.f32.xlu0 %v1309
  %v1311 = vpop.xlane.xlu0 %1310
  %v1312 = vsel %vm1080, %v1236, 0.0
  %1313 = vadd.xlane.f32.xlu0 %v1312
  %v1314 = vpop.xlane.xlu0 %1313
  %v1315 = vsel %vm1080, %v1238, 0.0
  %1316 = vadd.xlane.f32.xlu0 %v1315
  %v1317 = vpop.xlane.xlu0 %1316
  %v1318 = vsel %vm1080, %v1240, 0.0
  %1319 = vadd.xlane.f32.xlu0 %v1318
  %v1320 = vpop.xlane.xlu0 %1319
  %v1321 = vsel %vm1080, %v1242, 0.0
  %1322 = vadd.xlane.f32.xlu0 %v1321
  %v1323 = vpop.xlane.xlu0 %1322
  %v1324 = vsel %vm1080, %v1244, 0.0
  %1325 = vadd.xlane.f32.xlu0 %v1324
  %v1326 = vpop.xlane.xlu0 %1325
  %v1327 = vsel %vm1080, %v1246, 0.0
  %1328 = vadd.xlane.f32.xlu0 %v1327
  %v1329 = vpop.xlane.xlu0 %1328
  %v1330 = vsel %vm1080, %v1248, 0.0
  %1331 = vadd.xlane.f32.xlu0 %v1330
  %v1332 = vpop.xlane.xlu0 %1331
  %v1333 = vsel %vm1080, %v1250, 0.0
  %1334 = vadd.xlane.f32.xlu0 %v1333
  %v1335 = vpop.xlane.xlu0 %1334
  %v1336 = vsel %vm1080, %v1252, 0.0
  %1337 = vadd.xlane.f32.xlu0 %v1336
  %v1338 = vpop.xlane.xlu0 %1337
  %v1339 = vsel %vm1080, %v1254, 0.0
  %1340 = vadd.xlane.f32.xlu0 %v1339
  %v1341 = vpop.xlane.xlu0 %1340
  %v1342 = vsel %vm1080, %v1256, 0.0
  %1343 = vadd.xlane.f32.xlu0 %v1342
  %v1344 = vpop.xlane.xlu0 %1343
  %v1345 = vsel %vm1080, %v1258, 0.0
  %1346 = vadd.xlane.f32.xlu0 %v1345
  %v1347 = vpop.xlane.xlu0 %1346
  %v1348 = vsel %vm1080, %v1260, 0.0
  %1349 = vadd.xlane.f32.xlu0 %v1348
  %v1350 = vpop.xlane.xlu0 %1349
  %v1351 = vsel %vm1080, %v1262, 0.0
  %1352 = vadd.xlane.f32.xlu0 %v1351
  %v1353 = vpop.xlane.xlu0 %1352
  %v1354 = vsel %vm1080, %v1264, 0.0
  %1355 = vadd.xlane.f32.xlu0 %v1354
  %v1356 = vpop.xlane.xlu0 %1355
  %v1357 = vsel %vm1080, %v1266, 0.0
  %1358 = vadd.xlane.f32.xlu0 %v1357
  %v1359 = vpop.xlane.xlu0 %1358
  %v1360 = vsel %vm1080, %v1268, 0.0
  %1361 = vadd.xlane.f32.xlu0 %v1360
  %v1362 = vpop.xlane.xlu0 %1361
  %v1363 = vsel %vm1080, %v1270, 0.0
  %1364 = vadd.xlane.f32.xlu0 %v1363
  %v1365 = vpop.xlane.xlu0 %1364
  %v1366 = vsel %vm1080, %v1272, 0.0
  %1367 = vadd.xlane.f32.xlu0 %v1366
  %v1368 = vpop.xlane.xlu0 %1367
  %v1369 = vlog2.pop %v1275
  %v1370 = vmul.f32 %v1369, 0.6931472
  %v1371 = vlog2.pop %v1278
  %v1372 = vmul.f32 %v1371, 0.6931472
  %v1373 = vlog2.pop %v1281
  %v1374 = vmul.f32 %v1373, 0.6931472
  %v1375 = vlog2.pop %v1284
  %v1376 = vmul.f32 %v1375, 0.6931472
  %v1377 = vlog2.pop %v1287
  %v1378 = vmul.f32 %v1377, 0.6931472
  %v1379 = vlog2.pop %v1290
  %v1380 = vmul.f32 %v1379, 0.6931472
  %v1381 = vlog2.pop %v1293
  %v1382 = vmul.f32 %v1381, 0.6931472
  %v1383 = vlog2.pop %v1296
  %v1384 = vmul.f32 %v1383, 0.6931472
  %v1385 = vlog2.pop %v1299
  %v1386 = vmul.f32 %v1385, 0.6931472
  %v1387 = vlog2.pop %v1302
  %v1388 = vmul.f32 %v1387, 0.6931472
  %v1389 = vlog2.pop %v1305
  %v1390 = vmul.f32 %v1389, 0.6931472
  %v1391 = vlog2.pop %v1308
  %v1392 = vmul.f32 %v1391, 0.6931472
  %v1393 = vlog2.pop %v1311
  %v1394 = vmul.f32 %v1393, 0.6931472
  %v1395 = vlog2.pop %v1314
  %v1396 = vmul.f32 %v1395, 0.6931472
  %v1397 = vlog2.pop %v1317
  %v1398 = vmul.f32 %v1397, 0.6931472
  %v1399 = vlog2.pop %v1320
  %v1400 = vmul.f32 %v1399, 0.6931472
  %v1401 = vlog2.pop %v1323
  %v1402 = vmul.f32 %v1401, 0.6931472
  %v1403 = vlog2.pop %v1326
  %v1404 = vmul.f32 %v1403, 0.6931472
  %v1405 = vlog2.pop %v1329
  %v1406 = vmul.f32 %v1405, 0.6931472
  %v1407 = vlog2.pop %v1332
  %v1408 = vmul.f32 %v1407, 0.6931472
  %v1409 = vlog2.pop %v1335
  %v1410 = vmul.f32 %v1409, 0.6931472
  %v1411 = vlog2.pop %v1338
  %v1412 = vmul.f32 %v1411, 0.6931472
  %v1413 = vlog2.pop %v1341
  %v1414 = vmul.f32 %v1413, 0.6931472
  %v1415 = vlog2.pop %v1344
  %v1416 = vmul.f32 %v1415, 0.6931472
  %v1417 = vlog2.pop %v1347
  %v1418 = vmul.f32 %v1417, 0.6931472
  %v1419 = vlog2.pop %v1350
  %v1420 = vmul.f32 %v1419, 0.6931472
  %v1421 = vlog2.pop %v1353
  %v1422 = vmul.f32 %v1421, 0.6931472
  %v1423 = vlog2.pop %v1356
  %v1424 = vmul.f32 %v1423, 0.6931472
  %v1425 = vlog2.pop %v1359
  %v1426 = vmul.f32 %v1425, 0.6931472
  %v1427 = vlog2.pop %v1362
  %v1428 = vmul.f32 %v1427, 0.6931472
  %v1429 = vlog2.pop %v1365
  %v1430 = vmul.f32 %v1429, 0.6931472
  %v1431 = vlog2.pop %v1368
  %v1432 = vmul.f32 %v1431, 0.6931472
  %v1433 = vlaneseq
  %v1434 = vand.u32 %v1433, 127
  %v1435 = vld [vmem:[%s1] sm:$0xff]
  %v1436 = vld [vmem:[%s1 + $0x8] sm:$0xff]
  %v1437 = vld [vmem:[%s1 + $0x10] sm:$0xff]
  %v1438 = vld [vmem:[%s1 + $0x18] sm:$0xff]
  %v1439 = vld [vmem:[%s1 + $0x20] sm:$0xff]
  %v1440 = vld [vmem:[%s1 + $0x28] sm:$0xff]
  %v1441 = vld [vmem:[%s1 + $0x30] sm:$0xff]
  %v1442 = vld [vmem:[%s1 + $0x38] sm:$0xff]
  %v1443 = vld [vmem:[%s1 + $0x40] sm:$0xff]
  %v1444 = vld [vmem:[%s1 + $0x48] sm:$0xff]
  %v1445 = vld [vmem:[%s1 + $0x50] sm:$0xff]
  %v1446 = vld [vmem:[%s1 + $0x58] sm:$0xff]
  %v1447 = vld [vmem:[%s1 + $0x60] sm:$0xff]
  %v1448 = vld [vmem:[%s1 + $0x68] sm:$0xff]
  %v1449 = vld [vmem:[%s1 + $0x70] sm:$0xff]
  %v1450 = vld [vmem:[%s1 + $0x78] sm:$0xff]
  %v1451 = vld [vmem:[%s1 + $0x80] sm:$0xff]
  %v1452 = vld [vmem:[%s1 + $0x88] sm:$0xff]
  %v1453 = vld [vmem:[%s1 + $0x90] sm:$0xff]
  %v1454 = vld [vmem:[%s1 + $0x98] sm:$0xff]
  %v1455 = vld [vmem:[%s1 + $0xa0] sm:$0xff]
  %v1456 = vld [vmem:[%s1 + $0xa8] sm:$0xff]
  %v1457 = vld [vmem:[%s1 + $0xb0] sm:$0xff]
  %v1458 = vld [vmem:[%s1 + $0xb8] sm:$0xff]
  %v1459 = vld [vmem:[%s1 + $0xc0] sm:$0xff]
  %v1460 = vld [vmem:[%s1 + $0xc8] sm:$0xff]
  %v1461 = vld [vmem:[%s1 + $0xd0] sm:$0xff]
  %v1462 = vld [vmem:[%s1 + $0xd8] sm:$0xff]
  %v1463 = vld [vmem:[%s1 + $0xe0] sm:$0xff]
  %v1464 = vld [vmem:[%s1 + $0xe8] sm:$0xff]
  %v1465 = vld [vmem:[%s1 + $0xf0] sm:$0xff]
  %v1466 = vld [vmem:[%s1 + $0xf8] sm:$0xff]
  %1467 = vset.pattern.permute.xlu0 0
  %1468 = vperm.xlu0 %1467, %v1435
  %v1469 = vpop.permute.xlu0 %1468
  %1470 = vset.pattern.permute.xlu0 0
  %1471 = vperm.xlu0 %1470, %v1436
  %v1472 = vpop.permute.xlu0 %1471
  %1473 = vset.pattern.permute.xlu0 0
  %1474 = vperm.xlu0 %1473, %v1437
  %v1475 = vpop.permute.xlu0 %1474
  %1476 = vset.pattern.permute.xlu0 0
  %1477 = vperm.xlu0 %1476, %v1438
  %v1478 = vpop.permute.xlu0 %1477
  %1479 = vset.pattern.permute.xlu0 0
  %1480 = vperm.xlu0 %1479, %v1439
  %v1481 = vpop.permute.xlu0 %1480
  %1482 = vset.pattern.permute.xlu0 0
  %1483 = vperm.xlu0 %1482, %v1440
  %v1484 = vpop.permute.xlu0 %1483
  %1485 = vset.pattern.permute.xlu0 0
  %1486 = vperm.xlu0 %1485, %v1441
  %v1487 = vpop.permute.xlu0 %1486
  %1488 = vset.pattern.permute.xlu0 0
  %1489 = vperm.xlu0 %1488, %v1442
  %v1490 = vpop.permute.xlu0 %1489
  %1491 = vset.pattern.permute.xlu0 0
  %1492 = vperm.xlu0 %1491, %v1443
  %v1493 = vpop.permute.xlu0 %1492
  %1494 = vset.pattern.permute.xlu0 0
  %1495 = vperm.xlu0 %1494, %v1444
  %v1496 = vpop.permute.xlu0 %1495
  %1497 = vset.pattern.permute.xlu0 0
  %1498 = vperm.xlu0 %1497, %v1445
  %v1499 = vpop.permute.xlu0 %1498
  %1500 = vset.pattern.permute.xlu0 0
  %1501 = vperm.xlu0 %1500, %v1446
  %v1502 = vpop.permute.xlu0 %1501
  %1503 = vset.pattern.permute.xlu0 0
  %1504 = vperm.xlu0 %1503, %v1447
  %v1505 = vpop.permute.xlu0 %1504
  %1506 = vset.pattern.permute.xlu0 0
  %1507 = vperm.xlu0 %1506, %v1448
  %v1508 = vpop.permute.xlu0 %1507
  %1509 = vset.pattern.permute.xlu0 0
  %1510 = vperm.xlu0 %1509, %v1449
  %v1511 = vpop.permute.xlu0 %1510
  %1512 = vset.pattern.permute.xlu0 0
  %1513 = vperm.xlu0 %1512, %v1450
  %v1514 = vpop.permute.xlu0 %1513
  %1515 = vset.pattern.permute.xlu0 0
  %1516 = vperm.xlu0 %1515, %v1451
  %v1517 = vpop.permute.xlu0 %1516
  %1518 = vset.pattern.permute.xlu0 0
  %1519 = vperm.xlu0 %1518, %v1452
  %v1520 = vpop.permute.xlu0 %1519
  %1521 = vset.pattern.permute.xlu0 0
  %1522 = vperm.xlu0 %1521, %v1453
  %v1523 = vpop.permute.xlu0 %1522
  %1524 = vset.pattern.permute.xlu0 0
  %1525 = vperm.xlu0 %1524, %v1454
  %v1526 = vpop.permute.xlu0 %1525
  %1527 = vset.pattern.permute.xlu0 0
  %1528 = vperm.xlu0 %1527, %v1455
  %v1529 = vpop.permute.xlu0 %1528
  %1530 = vset.pattern.permute.xlu0 0
  %1531 = vperm.xlu0 %1530, %v1456
  %v1532 = vpop.permute.xlu0 %1531
  %1533 = vset.pattern.permute.xlu0 0
  %1534 = vperm.xlu0 %1533, %v1457
  %v1535 = vpop.permute.xlu0 %1534
  %1536 = vset.pattern.permute.xlu0 0
  %1537 = vperm.xlu0 %1536, %v1458
  %v1538 = vpop.permute.xlu0 %1537
  %1539 = vset.pattern.permute.xlu0 0
  %1540 = vperm.xlu0 %1539, %v1459
  %v1541 = vpop.permute.xlu0 %1540
  %1542 = vset.pattern.permute.xlu0 0
  %1543 = vperm.xlu0 %1542, %v1460
  %v1544 = vpop.permute.xlu0 %1543
  %1545 = vset.pattern.permute.xlu0 0
  %1546 = vperm.xlu0 %1545, %v1461
  %v1547 = vpop.permute.xlu0 %1546
  %1548 = vset.pattern.permute.xlu0 0
  %1549 = vperm.xlu0 %1548, %v1462
  %v1550 = vpop.permute.xlu0 %1549
  %1551 = vset.pattern.permute.xlu0 0
  %1552 = vperm.xlu0 %1551, %v1463
  %v1553 = vpop.permute.xlu0 %1552
  %1554 = vset.pattern.permute.xlu0 0
  %1555 = vperm.xlu0 %1554, %v1464
  %v1556 = vpop.permute.xlu0 %1555
  %1557 = vset.pattern.permute.xlu0 0
  %1558 = vperm.xlu0 %1557, %v1465
  %v1559 = vpop.permute.xlu0 %1558
  %1560 = vset.pattern.permute.xlu0 0
  %1561 = vperm.xlu0 %1560, %v1466
  %v1562 = vpop.permute.xlu0 %1561
  %vm1563 = vcmp.eq.s32.totalorder %v1434, %v1469
  %vm1564 = vcmp.eq.s32.totalorder %v1434, %v1472
  %vm1565 = vcmp.eq.s32.totalorder %v1434, %v1475
  %vm1566 = vcmp.eq.s32.totalorder %v1434, %v1478
  %vm1567 = vcmp.eq.s32.totalorder %v1434, %v1481
  %vm1568 = vcmp.eq.s32.totalorder %v1434, %v1484
  %vm1569 = vcmp.eq.s32.totalorder %v1434, %v1487
  %vm1570 = vcmp.eq.s32.totalorder %v1434, %v1490
  %vm1571 = vcmp.eq.s32.totalorder %v1434, %v1493
  %vm1572 = vcmp.eq.s32.totalorder %v1434, %v1496
  %vm1573 = vcmp.eq.s32.totalorder %v1434, %v1499
  %vm1574 = vcmp.eq.s32.totalorder %v1434, %v1502
  %vm1575 = vcmp.eq.s32.totalorder %v1434, %v1505
  %vm1576 = vcmp.eq.s32.totalorder %v1434, %v1508
  %vm1577 = vcmp.eq.s32.totalorder %v1434, %v1511
  %vm1578 = vcmp.eq.s32.totalorder %v1434, %v1514
  %vm1579 = vcmp.eq.s32.totalorder %v1434, %v1517
  %vm1580 = vcmp.eq.s32.totalorder %v1434, %v1520
  %vm1581 = vcmp.eq.s32.totalorder %v1434, %v1523
  %vm1582 = vcmp.eq.s32.totalorder %v1434, %v1526
  %vm1583 = vcmp.eq.s32.totalorder %v1434, %v1529
  %vm1584 = vcmp.eq.s32.totalorder %v1434, %v1532
  %vm1585 = vcmp.eq.s32.totalorder %v1434, %v1535
  %vm1586 = vcmp.eq.s32.totalorder %v1434, %v1538
  %vm1587 = vcmp.eq.s32.totalorder %v1434, %v1541
  %vm1588 = vcmp.eq.s32.totalorder %v1434, %v1544
  %vm1589 = vcmp.eq.s32.totalorder %v1434, %v1547
  %vm1590 = vcmp.eq.s32.totalorder %v1434, %v1550
  %vm1591 = vcmp.eq.s32.totalorder %v1434, %v1553
  %vm1592 = vcmp.eq.s32.totalorder %v1434, %v1556
  %vm1593 = vcmp.eq.s32.totalorder %v1434, %v1559
  %vm1594 = vcmp.eq.s32.totalorder %v1434, %v1562
  %v1595 = vsel %vm1563, 1, 0
  %v1596 = vsel %vm1564, 1, 0
  %v1597 = vsel %vm1565, 1, 0
  %v1598 = vsel %vm1566, 1, 0
  %v1599 = vsel %vm1567, 1, 0
  %v1600 = vsel %vm1568, 1, 0
  %v1601 = vsel %vm1569, 1, 0
  %v1602 = vsel %vm1570, 1, 0
  %v1603 = vsel %vm1571, 1, 0
  %v1604 = vsel %vm1572, 1, 0
  %v1605 = vsel %vm1573, 1, 0
  %v1606 = vsel %vm1574, 1, 0
  %v1607 = vsel %vm1575, 1, 0
  %v1608 = vsel %vm1576, 1, 0
  %v1609 = vsel %vm1577, 1, 0
  %v1610 = vsel %vm1578, 1, 0
  %v1611 = vsel %vm1579, 1, 0
  %v1612 = vsel %vm1580, 1, 0
  %v1613 = vsel %vm1581, 1, 0
  %v1614 = vsel %vm1582, 1, 0
  %v1615 = vsel %vm1583, 1, 0
  %v1616 = vsel %vm1584, 1, 0
  %v1617 = vsel %vm1585, 1, 0
  %v1618 = vsel %vm1586, 1, 0
  %v1619 = vsel %vm1587, 1, 0
  %v1620 = vsel %vm1588, 1, 0
  %v1621 = vsel %vm1589, 1, 0
  %v1622 = vsel %vm1590, 1, 0
  %v1623 = vsel %vm1591, 1, 0
  %v1624 = vsel %vm1592, 1, 0
  %v1625 = vsel %vm1593, 1, 0
  %v1626 = vsel %vm1594, 1, 0
  %v1627 = vcvt.s32.f32 %v1595
  %v1628 = vcvt.s32.f32 %v1596
  %v1629 = vcvt.s32.f32 %v1597
  %v1630 = vcvt.s32.f32 %v1598
  %v1631 = vcvt.s32.f32 %v1599
  %v1632 = vcvt.s32.f32 %v1600
  %v1633 = vcvt.s32.f32 %v1601
  %v1634 = vcvt.s32.f32 %v1602
  %v1635 = vcvt.s32.f32 %v1603
  %v1636 = vcvt.s32.f32 %v1604
  %v1637 = vcvt.s32.f32 %v1605
  %v1638 = vcvt.s32.f32 %v1606
  %v1639 = vcvt.s32.f32 %v1607
  %v1640 = vcvt.s32.f32 %v1608
  %v1641 = vcvt.s32.f32 %v1609
  %v1642 = vcvt.s32.f32 %v1610
  %v1643 = vcvt.s32.f32 %v1611
  %v1644 = vcvt.s32.f32 %v1612
  %v1645 = vcvt.s32.f32 %v1613
  %v1646 = vcvt.s32.f32 %v1614
  %v1647 = vcvt.s32.f32 %v1615
  %v1648 = vcvt.s32.f32 %v1616
  %v1649 = vcvt.s32.f32 %v1617
  %v1650 = vcvt.s32.f32 %v1618
  %v1651 = vcvt.s32.f32 %v1619
  %v1652 = vcvt.s32.f32 %v1620
  %v1653 = vcvt.s32.f32 %v1621
  %v1654 = vcvt.s32.f32 %v1622
  %v1655 = vcvt.s32.f32 %v1623
  %v1656 = vcvt.s32.f32 %v1624
  %v1657 = vcvt.s32.f32 %v1625
  %v1658 = vcvt.s32.f32 %v1626
  %v1659 = vmul.f32 %v1627, %v1177
  %v1660 = vmul.f32 %v1628, %v1178
  %v1661 = vmul.f32 %v1629, %v1179
  %v1662 = vmul.f32 %v1630, %v1180
  %v1663 = vmul.f32 %v1631, %v1181
  %v1664 = vmul.f32 %v1632, %v1182
  %v1665 = vmul.f32 %v1633, %v1183
  %v1666 = vmul.f32 %v1634, %v1184
  %v1667 = vmul.f32 %v1635, %v1185
  %v1668 = vmul.f32 %v1636, %v1186
  %v1669 = vmul.f32 %v1637, %v1187
  %v1670 = vmul.f32 %v1638, %v1188
  %v1671 = vmul.f32 %v1639, %v1189
  %v1672 = vmul.f32 %v1640, %v1190
  %v1673 = vmul.f32 %v1641, %v1191
  %v1674 = vmul.f32 %v1642, %v1192
  %v1675 = vmul.f32 %v1643, %v1193
  %v1676 = vmul.f32 %v1644, %v1194
  %v1677 = vmul.f32 %v1645, %v1195
  %v1678 = vmul.f32 %v1646, %v1196
  %v1679 = vmul.f32 %v1647, %v1197
  %v1680 = vmul.f32 %v1648, %v1198
  %v1681 = vmul.f32 %v1649, %v1199
  %v1682 = vmul.f32 %v1650, %v1200
  %v1683 = vmul.f32 %v1651, %v1201
  %v1684 = vmul.f32 %v1652, %v1202
  %v1685 = vmul.f32 %v1653, %v1203
  %v1686 = vmul.f32 %v1654, %v1204
  %v1687 = vmul.f32 %v1655, %v1205
  %v1688 = vmul.f32 %v1656, %v1206
  %v1689 = vmul.f32 %v1657, %v1207
  %v1690 = vmul.f32 %v1658, %v1208
  %v1691 = vsel %vm1080, %v1659, 0.0
  %1692 = vadd.xlane.f32.xlu0 %v1691
  %v1693 = vpop.xlane.xlu0 %1692
  %v1694 = vsel %vm1080, %v1660, 0.0
  %1695 = vadd.xlane.f32.xlu0 %v1694
  %v1696 = vpop.xlane.xlu0 %1695
  %v1697 = vsel %vm1080, %v1661, 0.0
  %1698 = vadd.xlane.f32.xlu0 %v1697
  %v1699 = vpop.xlane.xlu0 %1698
  %v1700 = vsel %vm1080, %v1662, 0.0
  %1701 = vadd.xlane.f32.xlu0 %v1700
  %v1702 = vpop.xlane.xlu0 %1701
  %v1703 = vsel %vm1080, %v1663, 0.0
  %1704 = vadd.xlane.f32.xlu0 %v1703
  %v1705 = vpop.xlane.xlu0 %1704
  %v1706 = vsel %vm1080, %v1664, 0.0
  %1707 = vadd.xlane.f32.xlu0 %v1706
  %v1708 = vpop.xlane.xlu0 %1707
  %v1709 = vsel %vm1080, %v1665, 0.0
  %1710 = vadd.xlane.f32.xlu0 %v1709
  %v1711 = vpop.xlane.xlu0 %1710
  %v1712 = vsel %vm1080, %v1666, 0.0
  %1713 = vadd.xlane.f32.xlu0 %v1712
  %v1714 = vpop.xlane.xlu0 %1713
  %v1715 = vsel %vm1080, %v1667, 0.0
  %1716 = vadd.xlane.f32.xlu0 %v1715
  %v1717 = vpop.xlane.xlu0 %1716
  %v1718 = vsel %vm1080, %v1668, 0.0
  %1719 = vadd.xlane.f32.xlu0 %v1718
  %v1720 = vpop.xlane.xlu0 %1719
  %v1721 = vsel %vm1080, %v1669, 0.0
  %1722 = vadd.xlane.f32.xlu0 %v1721
  %v1723 = vpop.xlane.xlu0 %1722
  %v1724 = vsel %vm1080, %v1670, 0.0
  %1725 = vadd.xlane.f32.xlu0 %v1724
  %v1726 = vpop.xlane.xlu0 %1725
  %v1727 = vsel %vm1080, %v1671, 0.0
  %1728 = vadd.xlane.f32.xlu0 %v1727
  %v1729 = vpop.xlane.xlu0 %1728
  %v1730 = vsel %vm1080, %v1672, 0.0
  %1731 = vadd.xlane.f32.xlu0 %v1730
  %v1732 = vpop.xlane.xlu0 %1731
  %v1733 = vsel %vm1080, %v1673, 0.0
  %1734 = vadd.xlane.f32.xlu0 %v1733
  %v1735 = vpop.xlane.xlu0 %1734
  %v1736 = vsel %vm1080, %v1674, 0.0
  %1737 = vadd.xlane.f32.xlu0 %v1736
  %v1738 = vpop.xlane.xlu0 %1737
  %v1739 = vsel %vm1080, %v1675, 0.0
  %1740 = vadd.xlane.f32.xlu0 %v1739
  %v1741 = vpop.xlane.xlu0 %1740
  %v1742 = vsel %vm1080, %v1676, 0.0
  %1743 = vadd.xlane.f32.xlu0 %v1742
  %v1744 = vpop.xlane.xlu0 %1743
  %v1745 = vsel %vm1080, %v1677, 0.0
  %1746 = vadd.xlane.f32.xlu0 %v1745
  %v1747 = vpop.xlane.xlu0 %1746
  %v1748 = vsel %vm1080, %v1678, 0.0
  %1749 = vadd.xlane.f32.xlu0 %v1748
  %v1750 = vpop.xlane.xlu0 %1749
  %v1751 = vsel %vm1080, %v1679, 0.0
  %1752 = vadd.xlane.f32.xlu0 %v1751
  %v1753 = vpop.xlane.xlu0 %1752
  %v1754 = vsel %vm1080, %v1680, 0.0
  %1755 = vadd.xlane.f32.xlu0 %v1754
  %v1756 = vpop.xlane.xlu0 %1755
  %v1757 = vsel %vm1080, %v1681, 0.0
  %1758 = vadd.xlane.f32.xlu0 %v1757
  %v1759 = vpop.xlane.xlu0 %1758
  %v1760 = vsel %vm1080, %v1682, 0.0
  %1761 = vadd.xlane.f32.xlu0 %v1760
  %v1762 = vpop.xlane.xlu0 %1761
  %v1763 = vsel %vm1080, %v1683, 0.0
  %1764 = vadd.xlane.f32.xlu0 %v1763
  %v1765 = vpop.xlane.xlu0 %1764
  %v1766 = vsel %vm1080, %v1684, 0.0
  %1767 = vadd.xlane.f32.xlu0 %v1766
  %v1768 = vpop.xlane.xlu0 %1767
  %v1769 = vsel %vm1080, %v1685, 0.0
  %1770 = vadd.xlane.f32.xlu0 %v1769
  %v1771 = vpop.xlane.xlu0 %1770
  %v1772 = vsel %vm1080, %v1686, 0.0
  %1773 = vadd.xlane.f32.xlu0 %v1772
  %v1774 = vpop.xlane.xlu0 %1773
  %v1775 = vsel %vm1080, %v1687, 0.0
  %1776 = vadd.xlane.f32.xlu0 %v1775
  %v1777 = vpop.xlane.xlu0 %1776
  %v1778 = vsel %vm1080, %v1688, 0.0
  %1779 = vadd.xlane.f32.xlu0 %v1778
  %v1780 = vpop.xlane.xlu0 %1779
  %v1781 = vsel %vm1080, %v1689, 0.0
  %1782 = vadd.xlane.f32.xlu0 %v1781
  %v1783 = vpop.xlane.xlu0 %1782
  %v1784 = vsel %vm1080, %v1690, 0.0
  %1785 = vadd.xlane.f32.xlu0 %v1784
  %v1786 = vpop.xlane.xlu0 %1785
  %v1787 = vsub.f32 %v1693, %v1370
  %v1788 = vsub.f32 %v1696, %v1372
  %v1789 = vsub.f32 %v1699, %v1374
  %v1790 = vsub.f32 %v1702, %v1376
  %v1791 = vsub.f32 %v1705, %v1378
  %v1792 = vsub.f32 %v1708, %v1380
  %v1793 = vsub.f32 %v1711, %v1382
  %v1794 = vsub.f32 %v1714, %v1384
  %v1795 = vsub.f32 %v1717, %v1386
  %v1796 = vsub.f32 %v1720, %v1388
  %v1797 = vsub.f32 %v1723, %v1390
  %v1798 = vsub.f32 %v1726, %v1392
  %v1799 = vsub.f32 %v1729, %v1394
  %v1800 = vsub.f32 %v1732, %v1396
  %v1801 = vsub.f32 %v1735, %v1398
  %v1802 = vsub.f32 %v1738, %v1400
  %v1803 = vsub.f32 %v1741, %v1402
  %v1804 = vsub.f32 %v1744, %v1404
  %v1805 = vsub.f32 %v1747, %v1406
  %v1806 = vsub.f32 %v1750, %v1408
  %v1807 = vsub.f32 %v1753, %v1410
  %v1808 = vsub.f32 %v1756, %v1412
  %v1809 = vsub.f32 %v1759, %v1414
  %v1810 = vsub.f32 %v1762, %v1416
  %v1811 = vsub.f32 %v1765, %v1418
  %v1812 = vsub.f32 %v1768, %v1420
  %v1813 = vsub.f32 %v1771, %v1422
  %v1814 = vsub.f32 %v1774, %v1424
  %v1815 = vsub.f32 %v1777, %v1426
  %v1816 = vsub.f32 %v1780, %v1428
  %v1817 = vsub.f32 %v1783, %v1430
  %v1818 = vsub.f32 %v1786, %v1432
  %v1819 = vmul.f32 %v1210, %v1177
  %v1820 = vmul.f32 %v1212, %v1178
  %v1821 = vmul.f32 %v1214, %v1179
  %v1822 = vmul.f32 %v1216, %v1180
  %v1823 = vmul.f32 %v1218, %v1181
  %v1824 = vmul.f32 %v1220, %v1182
  %v1825 = vmul.f32 %v1222, %v1183
  %v1826 = vmul.f32 %v1224, %v1184
  %v1827 = vmul.f32 %v1226, %v1185
  %v1828 = vmul.f32 %v1228, %v1186
  %v1829 = vmul.f32 %v1230, %v1187
  %v1830 = vmul.f32 %v1232, %v1188
  %v1831 = vmul.f32 %v1234, %v1189
  %v1832 = vmul.f32 %v1236, %v1190
  %v1833 = vmul.f32 %v1238, %v1191
  %v1834 = vmul.f32 %v1240, %v1192
  %v1835 = vmul.f32 %v1242, %v1193
  %v1836 = vmul.f32 %v1244, %v1194
  %v1837 = vmul.f32 %v1246, %v1195
  %v1838 = vmul.f32 %v1248, %v1196
  %v1839 = vmul.f32 %v1250, %v1197
  %v1840 = vmul.f32 %v1252, %v1198
  %v1841 = vmul.f32 %v1254, %v1199
  %v1842 = vmul.f32 %v1256, %v1200
  %v1843 = vmul.f32 %v1258, %v1201
  %v1844 = vmul.f32 %v1260, %v1202
  %v1845 = vmul.f32 %v1262, %v1203
  %v1846 = vmul.f32 %v1264, %v1204
  %v1847 = vmul.f32 %v1266, %v1205
  %v1848 = vmul.f32 %v1268, %v1206
  %v1849 = vmul.f32 %v1270, %v1207
  %v1850 = vmul.f32 %v1272, %v1208
  %v1851 = vsel %vm1080, %v1819, 0.0
  %1852 = vadd.xlane.f32.xlu0 %v1851
  %v1853 = vpop.xlane.xlu0 %1852
  %v1854 = vsel %vm1080, %v1820, 0.0
  %1855 = vadd.xlane.f32.xlu0 %v1854
  %v1856 = vpop.xlane.xlu0 %1855
  %v1857 = vsel %vm1080, %v1821, 0.0
  %1858 = vadd.xlane.f32.xlu0 %v1857
  %v1859 = vpop.xlane.xlu0 %1858
  %v1860 = vsel %vm1080, %v1822, 0.0
  %1861 = vadd.xlane.f32.xlu0 %v1860
  %v1862 = vpop.xlane.xlu0 %1861
  %v1863 = vsel %vm1080, %v1823, 0.0
  %1864 = vadd.xlane.f32.xlu0 %v1863
  %v1865 = vpop.xlane.xlu0 %1864
  %v1866 = vsel %vm1080, %v1824, 0.0
  %1867 = vadd.xlane.f32.xlu0 %v1866
  %v1868 = vpop.xlane.xlu0 %1867
  %v1869 = vsel %vm1080, %v1825, 0.0
  %1870 = vadd.xlane.f32.xlu0 %v1869
  %v1871 = vpop.xlane.xlu0 %1870
  %v1872 = vsel %vm1080, %v1826, 0.0
  %1873 = vadd.xlane.f32.xlu0 %v1872
  %v1874 = vpop.xlane.xlu0 %1873
  %v1875 = vsel %vm1080, %v1827, 0.0
  %1876 = vadd.xlane.f32.xlu0 %v1875
  %v1877 = vpop.xlane.xlu0 %1876
  %v1878 = vsel %vm1080, %v1828, 0.0
  %1879 = vadd.xlane.f32.xlu0 %v1878
  %v1880 = vpop.xlane.xlu0 %1879
  %v1881 = vsel %vm1080, %v1829, 0.0
  %1882 = vadd.xlane.f32.xlu0 %v1881
  %v1883 = vpop.xlane.xlu0 %1882
  %v1884 = vsel %vm1080, %v1830, 0.0
  %1885 = vadd.xlane.f32.xlu0 %v1884
  %v1886 = vpop.xlane.xlu0 %1885
  %v1887 = vsel %vm1080, %v1831, 0.0
  %1888 = vadd.xlane.f32.xlu0 %v1887
  %v1889 = vpop.xlane.xlu0 %1888
  %v1890 = vsel %vm1080, %v1832, 0.0
  %1891 = vadd.xlane.f32.xlu0 %v1890
  %v1892 = vpop.xlane.xlu0 %1891
  %v1893 = vsel %vm1080, %v1833, 0.0
  %1894 = vadd.xlane.f32.xlu0 %v1893
  %v1895 = vpop.xlane.xlu0 %1894
  %v1896 = vsel %vm1080, %v1834, 0.0
  %1897 = vadd.xlane.f32.xlu0 %v1896
  %v1898 = vpop.xlane.xlu0 %1897
  %v1899 = vsel %vm1080, %v1835, 0.0
  %1900 = vadd.xlane.f32.xlu0 %v1899
  %v1901 = vpop.xlane.xlu0 %1900
  %v1902 = vsel %vm1080, %v1836, 0.0
  %1903 = vadd.xlane.f32.xlu0 %v1902
  %v1904 = vpop.xlane.xlu0 %1903
  %v1905 = vsel %vm1080, %v1837, 0.0
  %1906 = vadd.xlane.f32.xlu0 %v1905
  %v1907 = vpop.xlane.xlu0 %1906
  %v1908 = vsel %vm1080, %v1838, 0.0
  %1909 = vadd.xlane.f32.xlu0 %v1908
  %v1910 = vpop.xlane.xlu0 %1909
  %v1911 = vsel %vm1080, %v1839, 0.0
  %1912 = vadd.xlane.f32.xlu0 %v1911
  %v1913 = vpop.xlane.xlu0 %1912
  %v1914 = vsel %vm1080, %v1840, 0.0
  %1915 = vadd.xlane.f32.xlu0 %v1914
  %v1916 = vpop.xlane.xlu0 %1915
  %v1917 = vsel %vm1080, %v1841, 0.0
  %1918 = vadd.xlane.f32.xlu0 %v1917
  %v1919 = vpop.xlane.xlu0 %1918
  %v1920 = vsel %vm1080, %v1842, 0.0
  %1921 = vadd.xlane.f32.xlu0 %v1920
  %v1922 = vpop.xlane.xlu0 %1921
  %v1923 = vsel %vm1080, %v1843, 0.0
  %1924 = vadd.xlane.f32.xlu0 %v1923
  %v1925 = vpop.xlane.xlu0 %1924
  %v1926 = vsel %vm1080, %v1844, 0.0
  %1927 = vadd.xlane.f32.xlu0 %v1926
  %v1928 = vpop.xlane.xlu0 %1927
  %v1929 = vsel %vm1080, %v1845, 0.0
  %1930 = vadd.xlane.f32.xlu0 %v1929
  %v1931 = vpop.xlane.xlu0 %1930
  %v1932 = vsel %vm1080, %v1846, 0.0
  %1933 = vadd.xlane.f32.xlu0 %v1932
  %v1934 = vpop.xlane.xlu0 %1933
  %v1935 = vsel %vm1080, %v1847, 0.0
  %1936 = vadd.xlane.f32.xlu0 %v1935
  %v1937 = vpop.xlane.xlu0 %1936
  %v1938 = vsel %vm1080, %v1848, 0.0
  %1939 = vadd.xlane.f32.xlu0 %v1938
  %v1940 = vpop.xlane.xlu0 %1939
  %v1941 = vsel %vm1080, %v1849, 0.0
  %1942 = vadd.xlane.f32.xlu0 %v1941
  %v1943 = vpop.xlane.xlu0 %1942
  %v1944 = vsel %vm1080, %v1850, 0.0
  %1945 = vadd.xlane.f32.xlu0 %v1944
  %v1946 = vpop.xlane.xlu0 %1945
  %v1947 = vrcp.pop %v1275
  %v1948 = vmul.f32 %v1853, %v1947
  %v1949 = vrcp.pop %v1278
  %v1950 = vmul.f32 %v1856, %v1949
  %v1951 = vrcp.pop %v1281
  %v1952 = vmul.f32 %v1859, %v1951
  %v1953 = vrcp.pop %v1284
  %v1954 = vmul.f32 %v1862, %v1953
  %v1955 = vrcp.pop %v1287
  %v1956 = vmul.f32 %v1865, %v1955
  %v1957 = vrcp.pop %v1290
  %v1958 = vmul.f32 %v1868, %v1957
  %v1959 = vrcp.pop %v1293
  %v1960 = vmul.f32 %v1871, %v1959
  %v1961 = vrcp.pop %v1296
  %v1962 = vmul.f32 %v1874, %v1961
  %v1963 = vrcp.pop %v1299
  %v1964 = vmul.f32 %v1877, %v1963
  %v1965 = vrcp.pop %v1302
  %v1966 = vmul.f32 %v1880, %v1965
  %v1967 = vrcp.pop %v1305
  %v1968 = vmul.f32 %v1883, %v1967
  %v1969 = vrcp.pop %v1308
  %v1970 = vmul.f32 %v1886, %v1969
  %v1971 = vrcp.pop %v1311
  %v1972 = vmul.f32 %v1889, %v1971
  %v1973 = vrcp.pop %v1314
  %v1974 = vmul.f32 %v1892, %v1973
  %v1975 = vrcp.pop %v1317
  %v1976 = vmul.f32 %v1895, %v1975
  %v1977 = vrcp.pop %v1320
  %v1978 = vmul.f32 %v1898, %v1977
  %v1979 = vrcp.pop %v1323
  %v1980 = vmul.f32 %v1901, %v1979
  %v1981 = vrcp.pop %v1326
  %v1982 = vmul.f32 %v1904, %v1981
  %v1983 = vrcp.pop %v1329
  %v1984 = vmul.f32 %v1907, %v1983
  %v1985 = vrcp.pop %v1332
  %v1986 = vmul.f32 %v1910, %v1985
  %v1987 = vrcp.pop %v1335
  %v1988 = vmul.f32 %v1913, %v1987
  %v1989 = vrcp.pop %v1338
  %v1990 = vmul.f32 %v1916, %v1989
  %v1991 = vrcp.pop %v1341
  %v1992 = vmul.f32 %v1919, %v1991
  %v1993 = vrcp.pop %v1344
  %v1994 = vmul.f32 %v1922, %v1993
  %v1995 = vrcp.pop %v1347
  %v1996 = vmul.f32 %v1925, %v1995
  %v1997 = vrcp.pop %v1350
  %v1998 = vmul.f32 %v1928, %v1997
  %v1999 = vrcp.pop %v1353
  %v2000 = vmul.f32 %v1931, %v1999
  %v2001 = vrcp.pop %v1356
  %v2002 = vmul.f32 %v1934, %v2001
  %v2003 = vrcp.pop %v1359
  %v2004 = vmul.f32 %v1937, %v2003
  %v2005 = vrcp.pop %v1362
  %v2006 = vmul.f32 %v1940, %v2005
  %v2007 = vrcp.pop %v1365
  %v2008 = vmul.f32 %v1943, %v2007
  %v2009 = vrcp.pop %v1368
  %v2010 = vmul.f32 %v1946, %v2009
  %v2011 = vsub.f32 %v1370, %v1948
  %v2012 = vsub.f32 %v1372, %v1950
  %v2013 = vsub.f32 %v1374, %v1952
  %v2014 = vsub.f32 %v1376, %v1954
  %v2015 = vsub.f32 %v1378, %v1956
  %v2016 = vsub.f32 %v1380, %v1958
  %v2017 = vsub.f32 %v1382, %v1960
  %v2018 = vsub.f32 %v1384, %v1962
  %v2019 = vsub.f32 %v1386, %v1964
  %v2020 = vsub.f32 %v1388, %v1966
  %v2021 = vsub.f32 %v1390, %v1968
  %v2022 = vsub.f32 %v1392, %v1970
  %v2023 = vsub.f32 %v1394, %v1972
  %v2024 = vsub.f32 %v1396, %v1974
  %v2025 = vsub.f32 %v1398, %v1976
  %v2026 = vsub.f32 %v1400, %v1978
  %v2027 = vsub.f32 %v1402, %v1980
  %v2028 = vsub.f32 %v1404, %v1982
  %v2029 = vsub.f32 %v1406, %v1984
  %v2030 = vsub.f32 %v1408, %v1986
  %v2031 = vsub.f32 %v1410, %v1988
  %v2032 = vsub.f32 %v1412, %v1990
  %v2033 = vsub.f32 %v1414, %v1992
  %v2034 = vsub.f32 %v1416, %v1994
  %v2035 = vsub.f32 %v1418, %v1996
  %v2036 = vsub.f32 %v1420, %v1998
  %v2037 = vsub.f32 %v1422, %v2000
  %v2038 = vsub.f32 %v1424, %v2002
  %v2039 = vsub.f32 %v1426, %v2004
  %v2040 = vsub.f32 %v1428, %v2006
  %v2041 = vsub.f32 %v1430, %v2008
  %v2042 = vsub.f32 %v1432, %v2010
  %vm2043 = vcmask 7168
  %2044 = vst.msk [vmem:[%s10] sm:$0xff] %vm2043, %v1787
  %2045 = vst.msk [vmem:[%s10 + $0x8] sm:$0xff] %vm2043, %v1788
  %2046 = vst.msk [vmem:[%s10 + $0x10] sm:$0xff] %vm2043, %v1789
  %2047 = vst.msk [vmem:[%s10 + $0x18] sm:$0xff] %vm2043, %v1790
  %2048 = vst.msk [vmem:[%s10 + $0x20] sm:$0xff] %vm2043, %v1791
  %2049 = vst.msk [vmem:[%s10 + $0x28] sm:$0xff] %vm2043, %v1792
  %2050 = vst.msk [vmem:[%s10 + $0x30] sm:$0xff] %vm2043, %v1793
  %2051 = vst.msk [vmem:[%s10 + $0x38] sm:$0xff] %vm2043, %v1794
  %2052 = vst.msk [vmem:[%s10 + $0x40] sm:$0xff] %vm2043, %v1795
  %2053 = vst.msk [vmem:[%s10 + $0x48] sm:$0xff] %vm2043, %v1796
  %2054 = vst.msk [vmem:[%s10 + $0x50] sm:$0xff] %vm2043, %v1797
  %2055 = vst.msk [vmem:[%s10 + $0x58] sm:$0xff] %vm2043, %v1798
  %2056 = vst.msk [vmem:[%s10 + $0x60] sm:$0xff] %vm2043, %v1799
  %2057 = vst.msk [vmem:[%s10 + $0x68] sm:$0xff] %vm2043, %v1800
  %2058 = vst.msk [vmem:[%s10 + $0x70] sm:$0xff] %vm2043, %v1801
  %2059 = vst.msk [vmem:[%s10 + $0x78] sm:$0xff] %vm2043, %v1802
  %2060 = vst.msk [vmem:[%s10 + $0x80] sm:$0xff] %vm2043, %v1803
  %2061 = vst.msk [vmem:[%s10 + $0x88] sm:$0xff] %vm2043, %v1804
  %2062 = vst.msk [vmem:[%s10 + $0x90] sm:$0xff] %vm2043, %v1805
  %2063 = vst.msk [vmem:[%s10 + $0x98] sm:$0xff] %vm2043, %v1806
  %2064 = vst.msk [vmem:[%s10 + $0xa0] sm:$0xff] %vm2043, %v1807
  %2065 = vst.msk [vmem:[%s10 + $0xa8] sm:$0xff] %vm2043, %v1808
  %2066 = vst.msk [vmem:[%s10 + $0xb0] sm:$0xff] %vm2043, %v1809
  %2067 = vst.msk [vmem:[%s10 + $0xb8] sm:$0xff] %vm2043, %v1810
  %2068 = vst.msk [vmem:[%s10 + $0xc0] sm:$0xff] %vm2043, %v1811
  %2069 = vst.msk [vmem:[%s10 + $0xc8] sm:$0xff] %vm2043, %v1812
  %2070 = vst.msk [vmem:[%s10 + $0xd0] sm:$0xff] %vm2043, %v1813
  %2071 = vst.msk [vmem:[%s10 + $0xd8] sm:$0xff] %vm2043, %v1814
  %2072 = vst.msk [vmem:[%s10 + $0xe0] sm:$0xff] %vm2043, %v1815
  %2073 = vst.msk [vmem:[%s10 + $0xe8] sm:$0xff] %vm2043, %v1816
  %2074 = vst.msk [vmem:[%s10 + $0xf0] sm:$0xff] %vm2043, %v1817
  %2075 = vst.msk [vmem:[%s10 + $0xf8] sm:$0xff] %vm2043, %v1818
  %2076 = vst.msk [vmem:[%s11] sm:$0xff] %vm2043, %v1048
  %2077 = vst.msk [vmem:[%s11 + $0x8] sm:$0xff] %vm2043, %v1049
  %2078 = vst.msk [vmem:[%s11 + $0x10] sm:$0xff] %vm2043, %v1050
  %2079 = vst.msk [vmem:[%s11 + $0x18] sm:$0xff] %vm2043, %v1051
  %2080 = vst.msk [vmem:[%s11 + $0x20] sm:$0xff] %vm2043, %v1052
  %2081 = vst.msk [vmem:[%s11 + $0x28] sm:$0xff] %vm2043, %v1053
  %2082 = vst.msk [vmem:[%s11 + $0x30] sm:$0xff] %vm2043, %v1054
  %2083 = vst.msk [vmem:[%s11 + $0x38] sm:$0xff] %vm2043, %v1055
  %2084 = vst.msk [vmem:[%s11 + $0x40] sm:$0xff] %vm2043, %v1056
  %2085 = vst.msk [vmem:[%s11 + $0x48] sm:$0xff] %vm2043, %v1057
  %2086 = vst.msk [vmem:[%s11 + $0x50] sm:$0xff] %vm2043, %v1058
  %2087 = vst.msk [vmem:[%s11 + $0x58] sm:$0xff] %vm2043, %v1059
  %2088 = vst.msk [vmem:[%s11 + $0x60] sm:$0xff] %vm2043, %v1060
  %2089 = vst.msk [vmem:[%s11 + $0x68] sm:$0xff] %vm2043, %v1061
  %2090 = vst.msk [vmem:[%s11 + $0x70] sm:$0xff] %vm2043, %v1062
  %2091 = vst.msk [vmem:[%s11 + $0x78] sm:$0xff] %vm2043, %v1063
  %2092 = vst.msk [vmem:[%s11 + $0x80] sm:$0xff] %vm2043, %v1064
  %2093 = vst.msk [vmem:[%s11 + $0x88] sm:$0xff] %vm2043, %v1065
  %2094 = vst.msk [vmem:[%s11 + $0x90] sm:$0xff] %vm2043, %v1066
  %2095 = vst.msk [vmem:[%s11 + $0x98] sm:$0xff] %vm2043, %v1067
  %2096 = vst.msk [vmem:[%s11 + $0xa0] sm:$0xff] %vm2043, %v1068
  %2097 = vst.msk [vmem:[%s11 + $0xa8] sm:$0xff] %vm2043, %v1069
  %2098 = vst.msk [vmem:[%s11 + $0xb0] sm:$0xff] %vm2043, %v1070
  %2099 = vst.msk [vmem:[%s11 + $0xb8] sm:$0xff] %vm2043, %v1071
  %2100 = vst.msk [vmem:[%s11 + $0xc0] sm:$0xff] %vm2043, %v1072
  %2101 = vst.msk [vmem:[%s11 + $0xc8] sm:$0xff] %vm2043, %v1073
  %2102 = vst.msk [vmem:[%s11 + $0xd0] sm:$0xff] %vm2043, %v1074
  %2103 = vst.msk [vmem:[%s11 + $0xd8] sm:$0xff] %vm2043, %v1075
  %2104 = vst.msk [vmem:[%s11 + $0xe0] sm:$0xff] %vm2043, %v1076
  %2105 = vst.msk [vmem:[%s11 + $0xe8] sm:$0xff] %vm2043, %v1077
  %2106 = vst.msk [vmem:[%s11 + $0xf0] sm:$0xff] %vm2043, %v1078
  %2107 = vst.msk [vmem:[%s11 + $0xf8] sm:$0xff] %vm2043, %v1079
  %2108 = vst.msk [vmem:[%s12] sm:$0xff] %vm2043, %v2011
  %2109 = vst.msk [vmem:[%s12 + $0x8] sm:$0xff] %vm2043, %v2012
  %2110 = vst.msk [vmem:[%s12 + $0x10] sm:$0xff] %vm2043, %v2013
  %2111 = vst.msk [vmem:[%s12 + $0x18] sm:$0xff] %vm2043, %v2014
  %2112 = vst.msk [vmem:[%s12 + $0x20] sm:$0xff] %vm2043, %v2015
  %2113 = vst.msk [vmem:[%s12 + $0x28] sm:$0xff] %vm2043, %v2016
  %2114 = vst.msk [vmem:[%s12 + $0x30] sm:$0xff] %vm2043, %v2017
  %2115 = vst.msk [vmem:[%s12 + $0x38] sm:$0xff] %vm2043, %v2018
  %2116 = vst.msk [vmem:[%s12 + $0x40] sm:$0xff] %vm2043, %v2019
  %2117 = vst.msk [vmem:[%s12 + $0x48] sm:$0xff] %vm2043, %v2020
  %2118 = vst.msk [vmem:[%s12 + $0x50] sm:$0xff] %vm2043, %v2021
  %2119 = vst.msk [vmem:[%s12 + $0x58] sm:$0xff] %vm2043, %v2022
  %2120 = vst.msk [vmem:[%s12 + $0x60] sm:$0xff] %vm2043, %v2023
  %2121 = vst.msk [vmem:[%s12 + $0x68] sm:$0xff] %vm2043, %v2024
  %2122 = vst.msk [vmem:[%s12 + $0x70] sm:$0xff] %vm2043, %v2025
  %2123 = vst.msk [vmem:[%s12 + $0x78] sm:$0xff] %vm2043, %v2026
  %2124 = vst.msk [vmem:[%s12 + $0x80] sm:$0xff] %vm2043, %v2027
  %2125 = vst.msk [vmem:[%s12 + $0x88] sm:$0xff] %vm2043, %v2028
  %2126 = vst.msk [vmem:[%s12 + $0x90] sm:$0xff] %vm2043, %v2029
  %2127 = vst.msk [vmem:[%s12 + $0x98] sm:$0xff] %vm2043, %v2030
  %2128 = vst.msk [vmem:[%s12 + $0xa0] sm:$0xff] %vm2043, %v2031
  %2129 = vst.msk [vmem:[%s12 + $0xa8] sm:$0xff] %vm2043, %v2032
  %2130 = vst.msk [vmem:[%s12 + $0xb0] sm:$0xff] %vm2043, %v2033
  %2131 = vst.msk [vmem:[%s12 + $0xb8] sm:$0xff] %vm2043, %v2034
  %2132 = vst.msk [vmem:[%s12 + $0xc0] sm:$0xff] %vm2043, %v2035
  %2133 = vst.msk [vmem:[%s12 + $0xc8] sm:$0xff] %vm2043, %v2036
  %2134 = vst.msk [vmem:[%s12 + $0xd0] sm:$0xff] %vm2043, %v2037
  %2135 = vst.msk [vmem:[%s12 + $0xd8] sm:$0xff] %vm2043, %v2038
  %2136 = vst.msk [vmem:[%s12 + $0xe0] sm:$0xff] %vm2043, %v2039
  %2137 = vst.msk [vmem:[%s12 + $0xe8] sm:$0xff] %vm2043, %v2040
  %2138 = vst.msk [vmem:[%s12 + $0xf0] sm:$0xff] %vm2043, %v2041
  %2139 = vst.msk [vmem:[%s12 + $0xf8] sm:$0xff] %vm2043, %v2042
  // Predicated region
  $region42: #{actor_critic_evaluate.1} parent=0 // pred_check
    _
  $region43: #{actor_critic_evaluate.1} parent=0 // pred_check_branch
    %2141 = sbr.rel (0) target = $region45
  $region44: #{actor_critic_evaluate.1} parent=0 // pred_region
    _
  $region45: #{actor_critic_evaluate.1} parent=0 // pred_fallthru
    _
  // Predicated region
  $region46: #{actor_critic_evaluate.1} parent=0 // pred_check
    _
  $region47: #{actor_critic_evaluate.1} parent=0 // pred_check_branch
    %2143 = sbr.rel (0) target = $region49
  $region48: #{actor_critic_evaluate.1} parent=0 // pred_region
    _
  $region49: #{actor_critic_evaluate.1} parent=0 // pred_fallthru
    _
  // Predicated region
  $region50: #{actor_critic_evaluate.1} parent=0 // pred_check
    _
  $region51: #{actor_critic_evaluate.1} parent=0 // pred_check_branch
    %2145 = sbr.rel (0) target = $region53
  $region52: #{actor_critic_evaluate.1} parent=0 // pred_region
    _
  $region53: #{actor_critic_evaluate.1} parent=0 // pred_fallthru
    _
  // Predicated region
  $region54: #{actor_critic_evaluate.1} parent=0 // pred_check
    _
  $region55: #{actor_critic_evaluate.1} parent=0 // pred_check_branch
    %2147 = sbr.rel (0) target = $region57
  $region56: #{actor_critic_evaluate.1} parent=0 // pred_region
    _
  $region57: #{actor_critic_evaluate.1} parent=0 // pred_fallthru
    _
  // Predicated region
  $region58: #{actor_critic_evaluate.1} parent=0 // pred_check
    _
  $region59: #{actor_critic_evaluate.1} parent=0 // pred_check_branch
    %2149 = sbr.rel (0) target = $region61
  $region60: #{actor_critic_evaluate.1} parent=0 // pred_region
    _
  $region61: #{actor_critic_evaluate.1} parent=0 // pred_fallthru
    _
  // Predicated region
  $region62: #{actor_critic_evaluate.1} parent=0 // pred_check
    _
  $region63: #{actor_critic_evaluate.1} parent=0 // pred_check_branch
    %2151 = sbr.rel (0) target = $region65
  $region64: #{actor_critic_evaluate.1} parent=0 // pred_region
    _
  $region65: #{actor_critic_evaluate.1} parent=0 // pred_fallthru
    _

</llo_original>
